<compile_context>
chip_gen: v7x
topology: tpu7x:2x2x1
jax: 0.10.0
libtpu: 0.0.40
codegen_flags: <defaults>
</compile_context>

<pallas_src>
import jax
import jax.numpy as jnp
from jax.experimental import pallas as pl
from jax.experimental.pallas import tpu as pltpu

# ----------------------------- model config (small) -----------------------------
SEQ_LEN = 8            # number of tokens
HIDDEN = 128           # config.hidden_size
NUM_HEADS = 4          # config.num_attention_heads
HEAD_DIM = HIDDEN // NUM_HEADS
INNER = 4 * HIDDEN     # config.n_inner (None -> 4 * hidden)
VOCAB = 512            # config.vocab_size
MAX_POS = 64           # config.max_position_embeddings
N_LAYERS = 2           # config.num_hidden_layers
EPS = 1e-5             # config.layer_norm_epsilon
ATTN_SCALE = HEAD_DIM ** -0.5

_SQRT_2_OVER_PI = 0.7978845608028654
_NEG_INF = -1e30       # stays f32 through the softmax (bf16 would overflow to -inf)


# ----------------------------- in-kernel helpers -----------------------------
def _layernorm(x, w, b):
    mu = jnp.mean(x, axis=-1, keepdims=True)
    xc = x - mu
    var = jnp.mean(xc * xc, axis=-1, keepdims=True)
    return xc * jax.lax.rsqrt(var + EPS) * w + b


def _gelu_new(x):
    # GPT-2 "gelu_new" (tanh approximation)
    return 0.5 * x * (1.0 + jnp.tanh(_SQRT_2_OVER_PI * (x + 0.044715 * x * x * x)))


# ----------------------------- fused all-layers kernel -----------------------------
def gpt2_stack_kernel(x_ref,
                      ln1_w_ref, ln1_b_ref,
                      w_qkv_ref, b_qkv_ref,
                      w_ao_ref, b_ao_ref,
                      ln2_w_ref, ln2_b_ref,
                      w_fc_ref, b_fc_ref,
                      w_mp_ref, b_mp_ref,
                      ln_f_w_ref, ln_f_b_ref,
                      o_ref,
                      h_scratch):
    layer = pl.program_id(0)
    bf16, f32 = jnp.bfloat16, jnp.float32

    # ---- residual stream lives in VMEM scratch across the layer grid axis ----
    @pl.when(layer == 0)
    def _():
        h_scratch[...] = x_ref[...]

    x = h_scratch[...]                                              # (T, H) f32

    # ---- ln_1 (f32) + FUSED QKV projection: one (T,H)@(H,3H) MXU matmul ----
    h = _layernorm(x, ln1_w_ref[0], ln1_b_ref[0])                   # (T, H) f32
    qkv = jnp.dot(h.astype(bf16), w_qkv_ref[0],
                  preferred_element_type=f32) + b_qkv_ref[0]        # (T, 3H) f32
    q = qkv[:, 0 * HIDDEN:1 * HIDDEN]                               # (T, H) static lane slices
    k = qkv[:, 1 * HIDDEN:2 * HIDDEN]
    v = qkv[:, 2 * HIDDEN:3 * HIDDEN]

    # ---- causal mask generated in-kernel (VPU ops, no HBM traffic) ----
    rows = jax.lax.broadcasted_iota(jnp.int32, (SEQ_LEN, SEQ_LEN), 0)
    cols = jax.lax.broadcasted_iota(jnp.int32, (SEQ_LEN, SEQ_LEN), 1)
    causal = jnp.where(cols <= rows, 0.0, _NEG_INF).astype(f32)     # (T, T)

    # ---- causal self-attention, per-head (static lane slices, unrolled) ----
    # TODO(synk): at real T, replace with flash-style KV-block tiling (online
    # softmax) and pre-transposed K so the XLU stays off the critical path.
    head_outs = []
    for hd in range(NUM_HEADS):
        sl = slice(hd * HEAD_DIM, (hd + 1) * HEAD_DIM)
        qh = q[:, sl].astype(bf16)                                  # (T, Dh)
        kh = k[:, sl].astype(bf16)
        vh = v[:, sl].astype(bf16)
        s = jax.lax.dot_general(qh, kh, (((1,), (1,)), ((), ())),
                                preferred_element_type=f32)         # (T, T) f32
        s = s * ATTN_SCALE + causal
        m = jnp.max(s, axis=-1, keepdims=True)
        p = jnp.exp(s - m)
        p = p * pl.reciprocal(jnp.sum(p, axis=-1, keepdims=True), approx=True)
        head_outs.append(jnp.dot(p.astype(bf16), vh,
                                 preferred_element_type=f32))       # (T, Dh) f32

    # ---- head merge folded into ONE (T,H)@(H,H) output projection ----
    o_merged = jnp.concatenate(head_outs, axis=-1)                  # (T, H) lane concat
    attn_out = jnp.dot(o_merged.astype(bf16), w_ao_ref[0],
                       preferred_element_type=f32) + b_ao_ref[0]    # (T, H)
    x = x + attn_out

    # ---- ln_2 + MLP (c_fc -> gelu_new -> c_proj) + residual ----
    h2 = _layernorm(x, ln2_w_ref[0], ln2_b_ref[0])
    h2 = jnp.dot(h2.astype(bf16), w_fc_ref[0],
                 preferred_element_type=f32) + b_fc_ref[0]          # (T, INNER)
    h2 = _gelu_new(h2)
    h2 = jnp.dot(h2.astype(bf16), w_mp_ref[0],
                 preferred_element_type=f32) + b_mp_ref[0]          # (T, H)
    x = x + h2

    h_scratch[...] = x

    # ---- fused final LayerNorm on the last layer iteration ----
    @pl.when(layer == pl.num_programs(0) - 1)
    def _():
        o_ref[...] = _layernorm(x, ln_f_w_ref[...], ln_f_b_ref[...])


# ----------------------------- pallas_call wrapper -----------------------------
def _shared_spec(shape):
    nd = len(shape)
    return pl.BlockSpec(tuple(shape), lambda l, _nd=nd: (0,) * _nd)


def _stacked_spec(shape):
    nd = len(shape)
    return pl.BlockSpec((1,) + tuple(shape[1:]),
                        lambda l, _nd=nd: (l,) + (0,) * (_nd - 1))


def run_gpt2_stack(x, stacked, ln_f_w, ln_f_b):
    sp = stacked
    weight_args = (
        sp["ln1_w"], sp["ln1_b"],
        sp["w_qkv"], sp["b_qkv"],
        sp["w_attn_proj"], sp["b_attn_proj"],
        sp["ln2_w"], sp["ln2_b"],
        sp["w_fc"], sp["b_fc"], sp["w_mlp_proj"], sp["b_mlp_proj"],
    )
    in_specs = ([_shared_spec(x.shape)]
                + [_stacked_spec(a.shape) for a in weight_args]
                + [_shared_spec(ln_f_w.shape), _shared_spec(ln_f_b.shape)])

    return pl.pallas_call(
        gpt2_stack_kernel,
        out_shape=jax.ShapeDtypeStruct(x.shape, jnp.float32),
        grid_spec=pltpu.PrefetchScalarGridSpec(
            num_scalar_prefetch=0,
            grid=(N_LAYERS,),
            in_specs=in_specs,
            out_specs=pl.BlockSpec(tuple(x.shape), lambda l: (0, 0)),
            scratch_shapes=[pltpu.VMEM((SEQ_LEN, HIDDEN), jnp.float32)],
        ),
        compiler_params=pltpu.CompilerParams(
            dimension_semantics=("arbitrary",),
            # explicit scoped-VMEM limit (v5e default is only 16 MiB); toy footprint
            # (double-buffered per-layer weights + activations) is well under this.
            vmem_limit_bytes=32 * 1024 * 1024,
        ),
    )(x, *weight_args, ln_f_w, ln_f_b)


# ----------------------------- parameter construction -----------------------------
def _stack_layer_params(layers):
    """Stack per-layer params into leading-dim-[N_LAYERS] arrays (host-side)."""
    names = ["ln1_w", "ln1_b", "w_qkv", "b_qkv", "w_attn_proj", "b_attn_proj",
             "ln2_w", "ln2_b", "w_fc", "b_fc", "w_mlp_proj", "b_mlp_proj"]
    return {n: jnp.stack([lp[n] for lp in layers], axis=0) for n in names}


def init_params(key):
    def normal(k, shape, scale=0.02):
        return scale * jax.random.normal(k, shape, dtype=jnp.float32)

    keys = jax.random.split(key, 4 + N_LAYERS)
    params = {
        "wte": normal(keys[0], (VOCAB, HIDDEN)),
        "wpe": normal(keys[1], (MAX_POS, HIDDEN)),
        "ln_f_w": 1.0 + normal(keys[2], (1, HIDDEN)),
        "ln_f_b": normal(keys[3], (1, HIDDEN)),
        "layers": [],
    }
    for li in range(N_LAYERS):
        lk = jax.random.split(keys[4 + li], 12)
        params["layers"].append({
            "ln1_w": 1.0 + normal(lk[0], (1, HIDDEN)),
            "ln1_b": normal(lk[1], (1, HIDDEN)),
            # matmul weights stored in bf16 (halved HBM traffic); biases/LN in f32.
            # TODO(synk): at real dims, store MLP weights fp8 (v7x) / int8+scales (v5e/v6e).
            "w_qkv": normal(lk[2], (HIDDEN, 3 * HIDDEN)).astype(jnp.bfloat16),
            "b_qkv": normal(lk[3], (1, 3 * HIDDEN)),
            "w_attn_proj": normal(lk[4], (HIDDEN, HIDDEN)).astype(jnp.bfloat16),
            "b_attn_proj": normal(lk[5], (1, HIDDEN)),
            "ln2_w": 1.0 + normal(lk[6], (1, HIDDEN)),
            "ln2_b": normal(lk[7], (1, HIDDEN)),
            "w_fc": normal(lk[8], (HIDDEN, INNER)).astype(jnp.bfloat16),
            "b_fc": normal(lk[9], (1, INNER)),
            "w_mlp_proj": normal(lk[10], (INNER, HIDDEN)).astype(jnp.bfloat16),
            "b_mlp_proj": normal(lk[11], (1, HIDDEN)),
        })
    params["stacked"] = _stack_layer_params(params["layers"])
    return params


# ----------------------------- full model forward -----------------------------
@jax.jit
def gpt2_forward(input_ids, position_ids, params):
    # Embedding gathers are glue (plain JAX); the whole transformer stack + ln_f
    # runs in a single fused Pallas kernel.
    inputs_embeds = jnp.take(params["wte"], input_ids, axis=0)       # (T, H)
    position_embeds = jnp.take(params["wpe"], position_ids, axis=0)  # (T, H)
    hidden = inputs_embeds + position_embeds

    return run_gpt2_stack(hidden, params["stacked"],
                          params["ln_f_w"], params["ln_f_b"])
    # TODO(synk): compute_logits (lm_head @ hidden) is a separate vLLM method, not
    # part of GPT2LMHeadModel.forward, so it is intentionally not implemented here.


# ----------------------------- reference (plain JAX) for sanity -----------------------------
def _ref_forward(input_ids, position_ids, params):
    bf16, f32 = jnp.bfloat16, jnp.float32

    def ln(x, w, b):
        mu = jnp.mean(x, axis=-1, keepdims=True)
        xc = x - mu
        var = jnp.mean(xc * xc, axis=-1, keepdims=True)
        return xc * jax.lax.rsqrt(var + EPS) * w + b

    def mm(a, w):  # bf16 matmul with f32 accumulation (mirrors the kernel's MXU use)
        return jnp.dot(a.astype(bf16), w, preferred_element_type=f32)

    x = params["wte"][input_ids] + params["wpe"][position_ids]
    T = x.shape[0]
    mask = jnp.tril(jnp.ones((T, T), bool))
    for lp in params["layers"]:
        h = ln(x, lp["ln1_w"], lp["ln1_b"])
        qkv = mm(h, lp["w_qkv"]) + lp["b_qkv"]
        q, k, v = jnp.split(qkv, 3, axis=-1)
        q = q.reshape(T, NUM_HEADS, HEAD_DIM).transpose(1, 0, 2)
        k = k.reshape(T, NUM_HEADS, HEAD_DIM).transpose(1, 0, 2)
        v = v.reshape(T, NUM_HEADS, HEAD_DIM).transpose(1, 0, 2)
        s = jnp.einsum("hqd,hkd->hqk", q.astype(bf16), k.astype(bf16),
                       preferred_element_type=f32) * ATTN_SCALE
        s = jnp.where(mask[None], s, _NEG_INF)
        p = jax.nn.softmax(s, axis=-1)
        a = jnp.einsum("hqk,hkd->hqd", p.astype(bf16), v.astype(bf16),
                       preferred_element_type=f32)
        a = a.transpose(1, 0, 2).reshape(T, HIDDEN)
        x = x + mm(a, lp["w_attn_proj"]) + lp["b_attn_proj"]
        h2 = ln(x, lp["ln2_w"], lp["ln2_b"])
        h2 = mm(h2, lp["w_fc"]) + lp["b_fc"]
        h2 = _gelu_new(h2)
        x = x + mm(h2, lp["w_mlp_proj"]) + lp["b_mlp_proj"]
    return ln(x, params["ln_f_w"], params["ln_f_b"])


# ----------------------------- main -----------------------------
if __name__ == "__main__":
    key = jax.random.PRNGKey(0)
    pkey, ikey = jax.random.split(key)
    params = init_params(pkey)

    input_ids = jax.random.randint(ikey, (SEQ_LEN,), 0, VOCAB, dtype=jnp.int32)
    position_ids = jnp.arange(SEQ_LEN, dtype=jnp.int32)

    out = gpt2_forward(input_ids, position_ids, params)
    out = jax.block_until_ready(out)

    ref = _ref_forward(input_ids, position_ids, params)
    assert out.shape == (SEQ_LEN, HIDDEN) and out.dtype == jnp.float32
    assert jnp.allclose(out, ref, atol=1e-2, rtol=1e-2), "mismatch vs reference"

    print("KERNEL_OK")
</pallas_src>

<mosaic_0001>
module attributes {stable_mosaic.version = 11 : i64} {
  func.func @gpt2_stack_kernel(%arg0: i32, %arg1: memref<8x128xf32, #tpu.memory_space<vmem>>, %arg2: memref<1x1x128xf32, #tpu.memory_space<vmem>>, %arg3: memref<1x1x128xf32, #tpu.memory_space<vmem>>, %arg4: memref<1x128x384xbf16, #tpu.memory_space<vmem>>, %arg5: memref<1x1x384xf32, #tpu.memory_space<vmem>>, %arg6: memref<1x128x128xbf16, #tpu.memory_space<vmem>>, %arg7: memref<1x1x128xf32, #tpu.memory_space<vmem>>, %arg8: memref<1x1x128xf32, #tpu.memory_space<vmem>>, %arg9: memref<1x1x128xf32, #tpu.memory_space<vmem>>, %arg10: memref<1x128x512xbf16, #tpu.memory_space<vmem>>, %arg11: memref<1x1x512xf32, #tpu.memory_space<vmem>>, %arg12: memref<1x512x128xbf16, #tpu.memory_space<vmem>>, %arg13: memref<1x1x128xf32, #tpu.memory_space<vmem>>, %arg14: memref<1x128xf32, #tpu.memory_space<vmem>>, %arg15: memref<1x128xf32, #tpu.memory_space<vmem>>, %arg16: memref<8x128xf32, #tpu.memory_space<vmem>>, %arg17: memref<8x128xf32, #tpu.memory_space<vmem>>) attributes {dimension_semantics = [#tpu.dimension_semantics<arbitrary>], iteration_bounds = array<i64: 2>, scalar_prefetch = 0 : i64, scratch_operands = 1 : i64, tpu.core_type = #tpu.core_type<tc>, window_params = [{pipeline_mode = #tpu.pipeline_mode<synchronous>, transform_indices = @transform_0, window_bounds = array<i64: 8, 128>}, {transform_indices = @transform_1, window_bounds = array<i64: 1, 1, 128>}, {transform_indices = @transform_2, window_bounds = array<i64: 1, 1, 128>}, {transform_indices = @transform_3, window_bounds = array<i64: 1, 128, 384>}, {transform_indices = @transform_4, window_bounds = array<i64: 1, 1, 384>}, {transform_indices = @transform_5, window_bounds = array<i64: 1, 128, 128>}, {transform_indices = @transform_6, window_bounds = array<i64: 1, 1, 128>}, {transform_indices = @transform_7, window_bounds = array<i64: 1, 1, 128>}, {transform_indices = @transform_8, window_bounds = array<i64: 1, 1, 128>}, {transform_indices = @transform_9, window_bounds = array<i64: 1, 128, 512>}, {transform_indices = @transform_10, window_bounds = array<i64: 1, 1, 512>}, {transform_indices = @transform_11, window_bounds = array<i64: 1, 512, 128>}, {transform_indices = @transform_12, window_bounds = array<i64: 1, 1, 128>}, {pipeline_mode = #tpu.pipeline_mode<synchronous>, transform_indices = @transform_13, window_bounds = array<i64: 1, 128>}, {pipeline_mode = #tpu.pipeline_mode<synchronous>, transform_indices = @transform_14, window_bounds = array<i64: 1, 128>}, {pipeline_mode = #tpu.pipeline_mode<synchronous>, transform_indices = @transform_15, window_bounds = array<i64: 8, 128>}]} {
    %c0_i32 = arith.constant 0 : i32
    %0 = arith.cmpi eq, %arg0, %c0_i32 : i32
    %1 = arith.extui %0 : i1 to i32
    %c0_i32_0 = arith.constant 0 : i32
    %2 = arith.cmpi ne, %1, %c0_i32_0 : i32
    scf.if %2 {
      %c0_80 = arith.constant 0 : index
      %c0_81 = arith.constant 0 : index
      %201 = vector.load %arg1[%c0_80, %c0_81] : memref<8x128xf32, #tpu.memory_space<vmem>>, vector<8x128xf32>
      %c0_82 = arith.constant 0 : index
      %c0_83 = arith.constant 0 : index
      %202 = vector.load %arg17[%c0_82, %c0_83] : memref<8x128xf32, #tpu.memory_space<vmem>>, vector<8x128xf32>
      tpu.vector_store %arg17[%c0_82, %c0_83], %201 {strides = array<i32>} : memref<8x128xf32, #tpu.memory_space<vmem>>, vector<8x128xf32>,
    } else {
    }
    %c0 = arith.constant 0 : index
    %c0_1 = arith.constant 0 : index
    %3 = vector.load %arg17[%c0, %c0_1] : memref<8x128xf32, #tpu.memory_space<vmem>>, vector<8x128xf32>
    %c0_2 = arith.constant 0 : index
    %c0_3 = arith.constant 0 : index
    %c0_4 = arith.constant 0 : index
    %4 = vector.load %arg2[%c0_2, %c0_3, %c0_4] : memref<1x1x128xf32, #tpu.memory_space<vmem>>, vector<1x1x128xf32>
    %5 = vector.shape_cast %4 : vector<1x1x128xf32> to vector<1x128xf32>
    %c0_5 = arith.constant 0 : index
    %c0_6 = arith.constant 0 : index
    %c0_7 = arith.constant 0 : index
    %6 = vector.load %arg3[%c0_5, %c0_6, %c0_7] : memref<1x1x128xf32, #tpu.memory_space<vmem>>, vector<1x1x128xf32>
    %7 = vector.shape_cast %6 : vector<1x1x128xf32> to vector<1x128xf32>
    %cst = arith.constant dense<0.000000e+00> : vector<8xf32>
    %8 = vector.multi_reduction <add>, %3, %cst [1] : vector<8x128xf32> to vector<8xf32>
    %9 = vector.shape_cast %8 : vector<8xf32> to vector<8x1xf32>
    %cst_8 = arith.constant 1.280000e+02 : f32
    %10 = vector.broadcast %cst_8 : f32 to vector<8x1xf32>
    %11 = arith.divf %9, %10 : vector<8x1xf32>
    %12 = vector.broadcast %11 : vector<8x1xf32> to vector<8x128xf32>
    %13 = arith.subf %3, %12 : vector<8x128xf32>
    %14 = arith.mulf %13, %13 : vector<8x128xf32>
    %cst_9 = arith.constant dense<0.000000e+00> : vector<8xf32>
    %15 = vector.multi_reduction <add>, %14, %cst_9 [1] : vector<8x128xf32> to vector<8xf32>
    %16 = vector.shape_cast %15 : vector<8xf32> to vector<8x1xf32>
    %cst_10 = arith.constant 1.280000e+02 : f32
    %17 = vector.broadcast %cst_10 : f32 to vector<8x1xf32>
    %18 = arith.divf %16, %17 : vector<8x1xf32>
    %cst_11 = arith.constant 9.99999974E-6 : f32
    %19 = vector.broadcast %cst_11 : f32 to vector<8x1xf32>
    %20 = arith.addf %18, %19 : vector<8x1xf32>
    %21 = math.rsqrt %20 : vector<8x1xf32>
    %22 = vector.broadcast %21 : vector<8x1xf32> to vector<8x128xf32>
    %23 = arith.mulf %13, %22 : vector<8x128xf32>
    %24 = vector.broadcast %5 : vector<1x128xf32> to vector<8x128xf32>
    %25 = arith.mulf %23, %24 : vector<8x128xf32>
    %26 = vector.broadcast %7 : vector<1x128xf32> to vector<8x128xf32>
    %27 = arith.addf %25, %26 : vector<8x128xf32>
    %28 = arith.truncf %27 : vector<8x128xf32> to vector<8x128xbf16>
    %c0_12 = arith.constant 0 : index
    %c0_13 = arith.constant 0 : index
    %c0_14 = arith.constant 0 : index
    %29 = vector.load %arg4[%c0_12, %c0_13, %c0_14] : memref<1x128x384xbf16, #tpu.memory_space<vmem>>, vector<1x128x384xbf16>
    %30 = vector.shape_cast %29 : vector<1x128x384xbf16> to vector<128x384xbf16>
    %cst_15 = arith.constant dense<0.000000e+00> : vector<8x384xf32>
    %31 = tpu.matmul %28, %30, %cst_15 {dimension_numbers = #tpu.dot_dimension_numbers<[1], [0], [0], [1], [0, 0, 1, 1], [], []>} : vector<8x128xbf16>, vector<128x384xbf16>, vector<8x384xf32> -> vector<8x384xf32>
    %c0_16 = arith.constant 0 : index
    %c0_17 = arith.constant 0 : index
    %c0_18 = arith.constant 0 : index
    %32 = vector.load %arg5[%c0_16, %c0_17, %c0_18] : memref<1x1x384xf32, #tpu.memory_space<vmem>>, vector<1x1x384xf32>
    %33 = vector.shape_cast %32 : vector<1x1x384xf32> to vector<1x384xf32>
    %34 = vector.broadcast %33 : vector<1x384xf32> to vector<8x384xf32>
    %35 = arith.addf %31, %34 : vector<8x384xf32>
    %36 = vector.extract_strided_slice %35 {offsets = [0, 0], sizes = [8, 128], strides = [1, 1]} : vector<8x384xf32> to vector<8x128xf32>
    %37 = vector.extract_strided_slice %35 {offsets = [0, 128], sizes = [8, 128], strides = [1, 1]} : vector<8x384xf32> to vector<8x128xf32>
    %38 = vector.extract_strided_slice %35 {offsets = [0, 256], sizes = [8, 128], strides = [1, 1]} : vector<8x384xf32> to vector<8x128xf32>
    %39 = tpu.iota {dimensions = array<i32: 0>} : vector<8x8xi32>
    %40 = tpu.iota {dimensions = array<i32: 1>} : vector<8x8xi32>
    %41 = arith.cmpi sle, %40, %39 : vector<8x8xi32>
    %cst_19 = arith.constant 0.000000e+00 : f32
    %cst_20 = arith.constant -1.000000e+30 : f32
    %42 = vector.broadcast %cst_19 : f32 to vector<8x8xf32>
    %43 = vector.broadcast %cst_20 : f32 to vector<8x8xf32>
    %44 = arith.select %41, %42, %43 : vector<8x8xi1>, vector<8x8xf32>
    %45 = vector.extract_strided_slice %36 {offsets = [0, 0], sizes = [8, 32], strides = [1, 1]} : vector<8x128xf32> to vector<8x32xf32>
    %46 = arith.truncf %45 : vector<8x32xf32> to vector<8x32xbf16>
    %47 = vector.extract_strided_slice %37 {offsets = [0, 0], sizes = [8, 32], strides = [1, 1]} : vector<8x128xf32> to vector<8x32xf32>
    %48 = arith.truncf %47 : vector<8x32xf32> to vector<8x32xbf16>
    %49 = vector.extract_strided_slice %38 {offsets = [0, 0], sizes = [8, 32], strides = [1, 1]} : vector<8x128xf32> to vector<8x32xf32>
    %50 = arith.truncf %49 : vector<8x32xf32> to vector<8x32xbf16>
    %cst_21 = arith.constant dense<0.000000e+00> : vector<8x8xf32>
    %51 = tpu.matmul %46, %48, %cst_21 {dimension_numbers = #tpu.dot_dimension_numbers<[1], [1], [0], [0], [0, 0, 1, 0], [], []>} : vector<8x32xbf16>, vector<8x32xbf16>, vector<8x8xf32> -> vector<8x8xf32>
    %cst_22 = arith.constant 0.176776692 : f32
    %52 = vector.broadcast %cst_22 : f32 to vector<8x8xf32>
    %53 = arith.mulf %51, %52 : vector<8x8xf32>
    %54 = arith.addf %53, %44 : vector<8x8xf32>
    %cst_23 = arith.constant dense<0xFF800000> : vector<8xf32>
    %55 = vector.multi_reduction <maximumf>, %54, %cst_23 [1] : vector<8x8xf32> to vector<8xf32>
    %56 = vector.shape_cast %55 : vector<8xf32> to vector<8x1xf32>
    %57 = vector.broadcast %56 : vector<8x1xf32> to vector<8x8xf32>
    %58 = arith.subf %54, %57 : vector<8x8xf32>
    %59 = math.exp %58 : vector<8x8xf32>
    %cst_24 = arith.constant dense<0.000000e+00> : vector<8xf32>
    %60 = vector.multi_reduction <add>, %59, %cst_24 [1] : vector<8x8xf32> to vector<8xf32>
    %61 = vector.shape_cast %60 : vector<8xf32> to vector<8x1xf32>
    %62 = tpu.reciprocal %61 {approx = true} : vector<8x1xf32> -> vector<8x1xf32>
    %63 = vector.broadcast %62 : vector<8x1xf32> to vector<8x8xf32>
    %64 = arith.mulf %59, %63 : vector<8x8xf32>
    %65 = arith.truncf %64 : vector<8x8xf32> to vector<8x8xbf16>
    %cst_25 = arith.constant dense<0.000000e+00> : vector<8x32xf32>
    %66 = tpu.matmul %65, %50, %cst_25 {dimension_numbers = #tpu.dot_dimension_numbers<[1], [0], [0], [1], [0, 0, 1, 1], [], []>} : vector<8x8xbf16>, vector<8x32xbf16>, vector<8x32xf32> -> vector<8x32xf32>
    %67 = vector.extract_strided_slice %36 {offsets = [0, 32], sizes = [8, 32], strides = [1, 1]} : vector<8x128xf32> to vector<8x32xf32>
    %68 = arith.truncf %67 : vector<8x32xf32> to vector<8x32xbf16>
    %69 = vector.extract_strided_slice %37 {offsets = [0, 32], sizes = [8, 32], strides = [1, 1]} : vector<8x128xf32> to vector<8x32xf32>
    %70 = arith.truncf %69 : vector<8x32xf32> to vector<8x32xbf16>
    %71 = vector.extract_strided_slice %38 {offsets = [0, 32], sizes = [8, 32], strides = [1, 1]} : vector<8x128xf32> to vector<8x32xf32>
    %72 = arith.truncf %71 : vector<8x32xf32> to vector<8x32xbf16>
    %cst_26 = arith.constant dense<0.000000e+00> : vector<8x8xf32>
    %73 = tpu.matmul %68, %70, %cst_26 {dimension_numbers = #tpu.dot_dimension_numbers<[1], [1], [0], [0], [0, 0, 1, 0], [], []>} : vector<8x32xbf16>, vector<8x32xbf16>, vector<8x8xf32> -> vector<8x8xf32>
    %cst_27 = arith.constant 0.176776692 : f32
    %74 = vector.broadcast %cst_27 : f32 to vector<8x8xf32>
    %75 = arith.mulf %73, %74 : vector<8x8xf32>
    %76 = arith.addf %75, %44 : vector<8x8xf32>
    %cst_28 = arith.constant dense<0xFF800000> : vector<8xf32>
    %77 = vector.multi_reduction <maximumf>, %76, %cst_28 [1] : vector<8x8xf32> to vector<8xf32>
    %78 = vector.shape_cast %77 : vector<8xf32> to vector<8x1xf32>
    %79 = vector.broadcast %78 : vector<8x1xf32> to vector<8x8xf32>
    %80 = arith.subf %76, %79 : vector<8x8xf32>
    %81 = math.exp %80 : vector<8x8xf32>
    %cst_29 = arith.constant dense<0.000000e+00> : vector<8xf32>
    %82 = vector.multi_reduction <add>, %81, %cst_29 [1] : vector<8x8xf32> to vector<8xf32>
    %83 = vector.shape_cast %82 : vector<8xf32> to vector<8x1xf32>
    %84 = tpu.reciprocal %83 {approx = true} : vector<8x1xf32> -> vector<8x1xf32>
    %85 = vector.broadcast %84 : vector<8x1xf32> to vector<8x8xf32>
    %86 = arith.mulf %81, %85 : vector<8x8xf32>
    %87 = arith.truncf %86 : vector<8x8xf32> to vector<8x8xbf16>
    %cst_30 = arith.constant dense<0.000000e+00> : vector<8x32xf32>
    %88 = tpu.matmul %87, %72, %cst_30 {dimension_numbers = #tpu.dot_dimension_numbers<[1], [0], [0], [1], [0, 0, 1, 1], [], []>} : vector<8x8xbf16>, vector<8x32xbf16>, vector<8x32xf32> -> vector<8x32xf32>
    %89 = vector.extract_strided_slice %36 {offsets = [0, 64], sizes = [8, 32], strides = [1, 1]} : vector<8x128xf32> to vector<8x32xf32>
    %90 = arith.truncf %89 : vector<8x32xf32> to vector<8x32xbf16>
    %91 = vector.extract_strided_slice %37 {offsets = [0, 64], sizes = [8, 32], strides = [1, 1]} : vector<8x128xf32> to vector<8x32xf32>
    %92 = arith.truncf %91 : vector<8x32xf32> to vector<8x32xbf16>
    %93 = vector.extract_strided_slice %38 {offsets = [0, 64], sizes = [8, 32], strides = [1, 1]} : vector<8x128xf32> to vector<8x32xf32>
    %94 = arith.truncf %93 : vector<8x32xf32> to vector<8x32xbf16>
    %cst_31 = arith.constant dense<0.000000e+00> : vector<8x8xf32>
    %95 = tpu.matmul %90, %92, %cst_31 {dimension_numbers = #tpu.dot_dimension_numbers<[1], [1], [0], [0], [0, 0, 1, 0], [], []>} : vector<8x32xbf16>, vector<8x32xbf16>, vector<8x8xf32> -> vector<8x8xf32>
    %cst_32 = arith.constant 0.176776692 : f32
    %96 = vector.broadcast %cst_32 : f32 to vector<8x8xf32>
    %97 = arith.mulf %95, %96 : vector<8x8xf32>
    %98 = arith.addf %97, %44 : vector<8x8xf32>
    %cst_33 = arith.constant dense<0xFF800000> : vector<8xf32>
    %99 = vector.multi_reduction <maximumf>, %98, %cst_33 [1] : vector<8x8xf32> to vector<8xf32>
    %100 = vector.shape_cast %99 : vector<8xf32> to vector<8x1xf32>
    %101 = vector.broadcast %100 : vector<8x1xf32> to vector<8x8xf32>
    %102 = arith.subf %98, %101 : vector<8x8xf32>
    %103 = math.exp %102 : vector<8x8xf32>
    %cst_34 = arith.constant dense<0.000000e+00> : vector<8xf32>
    %104 = vector.multi_reduction <add>, %103, %cst_34 [1] : vector<8x8xf32> to vector<8xf32>
    %105 = vector.shape_cast %104 : vector<8xf32> to vector<8x1xf32>
    %106 = tpu.reciprocal %105 {approx = true} : vector<8x1xf32> -> vector<8x1xf32>
    %107 = vector.broadcast %106 : vector<8x1xf32> to vector<8x8xf32>
    %108 = arith.mulf %103, %107 : vector<8x8xf32>
    %109 = arith.truncf %108 : vector<8x8xf32> to vector<8x8xbf16>
    %cst_35 = arith.constant dense<0.000000e+00> : vector<8x32xf32>
    %110 = tpu.matmul %109, %94, %cst_35 {dimension_numbers = #tpu.dot_dimension_numbers<[1], [0], [0], [1], [0, 0, 1, 1], [], []>} : vector<8x8xbf16>, vector<8x32xbf16>, vector<8x32xf32> -> vector<8x32xf32>
    %111 = vector.extract_strided_slice %36 {offsets = [0, 96], sizes = [8, 32], strides = [1, 1]} : vector<8x128xf32> to vector<8x32xf32>
    %112 = arith.truncf %111 : vector<8x32xf32> to vector<8x32xbf16>
    %113 = vector.extract_strided_slice %37 {offsets = [0, 96], sizes = [8, 32], strides = [1, 1]} : vector<8x128xf32> to vector<8x32xf32>
    %114 = arith.truncf %113 : vector<8x32xf32> to vector<8x32xbf16>
    %115 = vector.extract_strided_slice %38 {offsets = [0, 96], sizes = [8, 32], strides = [1, 1]} : vector<8x128xf32> to vector<8x32xf32>
    %116 = arith.truncf %115 : vector<8x32xf32> to vector<8x32xbf16>
    %cst_36 = arith.constant dense<0.000000e+00> : vector<8x8xf32>
    %117 = tpu.matmul %112, %114, %cst_36 {dimension_numbers = #tpu.dot_dimension_numbers<[1], [1], [0], [0], [0, 0, 1, 0], [], []>} : vector<8x32xbf16>, vector<8x32xbf16>, vector<8x8xf32> -> vector<8x8xf32>
    %cst_37 = arith.constant 0.176776692 : f32
    %118 = vector.broadcast %cst_37 : f32 to vector<8x8xf32>
    %119 = arith.mulf %117, %118 : vector<8x8xf32>
    %120 = arith.addf %119, %44 : vector<8x8xf32>
    %cst_38 = arith.constant dense<0xFF800000> : vector<8xf32>
    %121 = vector.multi_reduction <maximumf>, %120, %cst_38 [1] : vector<8x8xf32> to vector<8xf32>
    %122 = vector.shape_cast %121 : vector<8xf32> to vector<8x1xf32>
    %123 = vector.broadcast %122 : vector<8x1xf32> to vector<8x8xf32>
    %124 = arith.subf %120, %123 : vector<8x8xf32>
    %125 = math.exp %124 : vector<8x8xf32>
    %cst_39 = arith.constant dense<0.000000e+00> : vector<8xf32>
    %126 = vector.multi_reduction <add>, %125, %cst_39 [1] : vector<8x8xf32> to vector<8xf32>
    %127 = vector.shape_cast %126 : vector<8xf32> to vector<8x1xf32>
    %128 = tpu.reciprocal %127 {approx = true} : vector<8x1xf32> -> vector<8x1xf32>
    %129 = vector.broadcast %128 : vector<8x1xf32> to vector<8x8xf32>
    %130 = arith.mulf %125, %129 : vector<8x8xf32>
    %131 = arith.truncf %130 : vector<8x8xf32> to vector<8x8xbf16>
    %cst_40 = arith.constant dense<0.000000e+00> : vector<8x32xf32>
    %132 = tpu.matmul %131, %116, %cst_40 {dimension_numbers = #tpu.dot_dimension_numbers<[1], [0], [0], [1], [0, 0, 1, 1], [], []>} : vector<8x8xbf16>, vector<8x32xbf16>, vector<8x32xf32> -> vector<8x32xf32>
    %133 = tpu.concatenate %66, %88, %110, %132 in 1 : vector<8x32xf32>, vector<8x32xf32>, vector<8x32xf32>, vector<8x32xf32> -> vector<8x128xf32>
    %134 = arith.truncf %133 : vector<8x128xf32> to vector<8x128xbf16>
    %c0_41 = arith.constant 0 : index
    %c0_42 = arith.constant 0 : index
    %c0_43 = arith.constant 0 : index
    %135 = vector.load %arg6[%c0_41, %c0_42, %c0_43] : memref<1x128x128xbf16, #tpu.memory_space<vmem>>, vector<1x128x128xbf16>
    %136 = vector.shape_cast %135 : vector<1x128x128xbf16> to vector<128x128xbf16>
    %cst_44 = arith.constant dense<0.000000e+00> : vector<8x128xf32>
    %137 = tpu.matmul %134, %136, %cst_44 {dimension_numbers = #tpu.dot_dimension_numbers<[1], [0], [0], [1], [0, 0, 1, 1], [], []>} : vector<8x128xbf16>, vector<128x128xbf16>, vector<8x128xf32> -> vector<8x128xf32>
    %c0_45 = arith.constant 0 : index
    %c0_46 = arith.constant 0 : index
    %c0_47 = arith.constant 0 : index
    %138 = vector.load %arg7[%c0_45, %c0_46, %c0_47] : memref<1x1x128xf32, #tpu.memory_space<vmem>>, vector<1x1x128xf32>
    %139 = vector.shape_cast %138 : vector<1x1x128xf32> to vector<1x128xf32>
    %140 = vector.broadcast %139 : vector<1x128xf32> to vector<8x128xf32>
    %141 = arith.addf %137, %140 : vector<8x128xf32>
    %142 = arith.addf %3, %141 : vector<8x128xf32>
    %c0_48 = arith.constant 0 : index
    %c0_49 = arith.constant 0 : index
    %c0_50 = arith.constant 0 : index
    %143 = vector.load %arg8[%c0_48, %c0_49, %c0_50] : memref<1x1x128xf32, #tpu.memory_space<vmem>>, vector<1x1x128xf32>
    %144 = vector.shape_cast %143 : vector<1x1x128xf32> to vector<1x128xf32>
    %c0_51 = arith.constant 0 : index
    %c0_52 = arith.constant 0 : index
    %c0_53 = arith.constant 0 : index
    %145 = vector.load %arg9[%c0_51, %c0_52, %c0_53] : memref<1x1x128xf32, #tpu.memory_space<vmem>>, vector<1x1x128xf32>
    %146 = vector.shape_cast %145 : vector<1x1x128xf32> to vector<1x128xf32>
    %cst_54 = arith.constant dense<0.000000e+00> : vector<8xf32>
    %147 = vector.multi_reduction <add>, %142, %cst_54 [1] : vector<8x128xf32> to vector<8xf32>
    %148 = vector.shape_cast %147 : vector<8xf32> to vector<8x1xf32>
    %cst_55 = arith.constant 1.280000e+02 : f32
    %149 = vector.broadcast %cst_55 : f32 to vector<8x1xf32>
    %150 = arith.divf %148, %149 : vector<8x1xf32>
    %151 = vector.broadcast %150 : vector<8x1xf32> to vector<8x128xf32>
    %152 = arith.subf %142, %151 : vector<8x128xf32>
    %153 = arith.mulf %152, %152 : vector<8x128xf32>
    %cst_56 = arith.constant dense<0.000000e+00> : vector<8xf32>
    %154 = vector.multi_reduction <add>, %153, %cst_56 [1] : vector<8x128xf32> to vector<8xf32>
    %155 = vector.shape_cast %154 : vector<8xf32> to vector<8x1xf32>
    %cst_57 = arith.constant 1.280000e+02 : f32
    %156 = vector.broadcast %cst_57 : f32 to vector<8x1xf32>
    %157 = arith.divf %155, %156 : vector<8x1xf32>
    %cst_58 = arith.constant 9.99999974E-6 : f32
    %158 = vector.broadcast %cst_58 : f32 to vector<8x1xf32>
    %159 = arith.addf %157, %158 : vector<8x1xf32>
    %160 = math.rsqrt %159 : vector<8x1xf32>
    %161 = vector.broadcast %160 : vector<8x1xf32> to vector<8x128xf32>
    %162 = arith.mulf %152, %161 : vector<8x128xf32>
    %163 = vector.broadcast %144 : vector<1x128xf32> to vector<8x128xf32>
    %164 = arith.mulf %162, %163 : vector<8x128xf32>
    %165 = vector.broadcast %146 : vector<1x128xf32> to vector<8x128xf32>
    %166 = arith.addf %164, %165 : vector<8x128xf32>
    %167 = arith.truncf %166 : vector<8x128xf32> to vector<8x128xbf16>
    %c0_59 = arith.constant 0 : index
    %c0_60 = arith.constant 0 : index
    %c0_61 = arith.constant 0 : index
    %168 = vector.load %arg10[%c0_59, %c0_60, %c0_61] : memref<1x128x512xbf16, #tpu.memory_space<vmem>>, vector<1x128x512xbf16>
    %169 = vector.shape_cast %168 : vector<1x128x512xbf16> to vector<128x512xbf16>
    %cst_62 = arith.constant dense<0.000000e+00> : vector<8x512xf32>
    %170 = tpu.matmul %167, %169, %cst_62 {dimension_numbers = #tpu.dot_dimension_numbers<[1], [0], [0], [1], [0, 0, 1, 1], [], []>} : vector<8x128xbf16>, vector<128x512xbf16>, vector<8x512xf32> -> vector<8x512xf32>
    %c0_63 = arith.constant 0 : index
    %c0_64 = arith.constant 0 : index
    %c0_65 = arith.constant 0 : index
    %171 = vector.load %arg11[%c0_63, %c0_64, %c0_65] : memref<1x1x512xf32, #tpu.memory_space<vmem>>, vector<1x1x512xf32>
    %172 = vector.shape_cast %171 : vector<1x1x512xf32> to vector<1x512xf32>
    %173 = vector.broadcast %172 : vector<1x512xf32> to vector<8x512xf32>
    %174 = arith.addf %170, %173 : vector<8x512xf32>
    %cst_66 = arith.constant 5.000000e-01 : f32
    %175 = vector.broadcast %cst_66 : f32 to vector<8x512xf32>
    %176 = arith.mulf %175, %174 : vector<8x512xf32>
    %cst_67 = arith.constant 4.471500e-02 : f32
    %177 = vector.broadcast %cst_67 : f32 to vector<8x512xf32>
    %178 = arith.mulf %177, %174 : vector<8x512xf32>
    %179 = arith.mulf %178, %174 : vector<8x512xf32>
    %180 = arith.mulf %179, %174 : vector<8x512xf32>
    %181 = arith.addf %174, %180 : vector<8x512xf32>
    %cst_68 = arith.constant 0.797884583 : f32
    %182 = vector.broadcast %cst_68 : f32 to vector<8x512xf32>
    %183 = arith.mulf %182, %181 : vector<8x512xf32>
    %184 = math.tanh %183 : vector<8x512xf32>
    %cst_69 = arith.constant 1.000000e+00 : f32
    %185 = vector.broadcast %cst_69 : f32 to vector<8x512xf32>
    %186 = arith.addf %185, %184 : vector<8x512xf32>
    %187 = arith.mulf %176, %186 : vector<8x512xf32>
    %188 = arith.truncf %187 : vector<8x512xf32> to vector<8x512xbf16>
    %c0_70 = arith.constant 0 : index
    %c0_71 = arith.constant 0 : index
    %c0_72 = arith.constant 0 : index
    %189 = vector.load %arg12[%c0_70, %c0_71, %c0_72] : memref<1x512x128xbf16, #tpu.memory_space<vmem>>, vector<1x512x128xbf16>
    %190 = vector.shape_cast %189 : vector<1x512x128xbf16> to vector<512x128xbf16>
    %cst_73 = arith.constant dense<0.000000e+00> : vector<8x128xf32>
    %191 = tpu.matmul %188, %190, %cst_73 {dimension_numbers = #tpu.dot_dimension_numbers<[1], [0], [0], [1], [0, 0, 1, 1], [], []>} : vector<8x512xbf16>, vector<512x128xbf16>, vector<8x128xf32> -> vector<8x128xf32>
    %c0_74 = arith.constant 0 : index
    %c0_75 = arith.constant 0 : index
    %c0_76 = arith.constant 0 : index
    %192 = vector.load %arg13[%c0_74, %c0_75, %c0_76] : memref<1x1x128xf32, #tpu.memory_space<vmem>>, vector<1x1x128xf32>
    %193 = vector.shape_cast %192 : vector<1x1x128xf32> to vector<1x128xf32>
    %194 = vector.broadcast %193 : vector<1x128xf32> to vector<8x128xf32>
    %195 = arith.addf %191, %194 : vector<8x128xf32>
    %196 = arith.addf %142, %195 : vector<8x128xf32>
    %c0_77 = arith.constant 0 : index
    %c0_78 = arith.constant 0 : index
    %197 = vector.load %arg17[%c0_77, %c0_78] : memref<8x128xf32, #tpu.memory_space<vmem>>, vector<8x128xf32>
    tpu.vector_store %arg17[%c0_77, %c0_78], %196 {strides = array<i32>} : memref<8x128xf32, #tpu.memory_space<vmem>>, vector<8x128xf32>,
    %c1_i32 = arith.constant 1 : i32
    %198 = arith.cmpi eq, %arg0, %c1_i32 : i32
    %199 = arith.extui %198 : i1 to i32
    %c0_i32_79 = arith.constant 0 : i32
    %200 = arith.cmpi ne, %199, %c0_i32_79 : i32
    scf.if %200 {
      %c0_80 = arith.constant 0 : index
      %c0_81 = arith.constant 0 : index
      %201 = vector.load %arg14[%c0_80, %c0_81] : memref<1x128xf32, #tpu.memory_space<vmem>>, vector<1x128xf32>
      %c0_82 = arith.constant 0 : index
      %c0_83 = arith.constant 0 : index
      %202 = vector.load %arg15[%c0_82, %c0_83] : memref<1x128xf32, #tpu.memory_space<vmem>>, vector<1x128xf32>
      %cst_84 = arith.constant dense<0.000000e+00> : vector<8xf32>
      %203 = vector.multi_reduction <add>, %196, %cst_84 [1] : vector<8x128xf32> to vector<8xf32>
      %204 = vector.shape_cast %203 : vector<8xf32> to vector<8x1xf32>
      %cst_85 = arith.constant 1.280000e+02 : f32
      %205 = vector.broadcast %cst_85 : f32 to vector<8x1xf32>
      %206 = arith.divf %204, %205 : vector<8x1xf32>
      %207 = vector.broadcast %206 : vector<8x1xf32> to vector<8x128xf32>
      %208 = arith.subf %196, %207 : vector<8x128xf32>
      %209 = arith.mulf %208, %208 : vector<8x128xf32>
      %cst_86 = arith.constant dense<0.000000e+00> : vector<8xf32>
      %210 = vector.multi_reduction <add>, %209, %cst_86 [1] : vector<8x128xf32> to vector<8xf32>
      %211 = vector.shape_cast %210 : vector<8xf32> to vector<8x1xf32>
      %cst_87 = arith.constant 1.280000e+02 : f32
      %212 = vector.broadcast %cst_87 : f32 to vector<8x1xf32>
      %213 = arith.divf %211, %212 : vector<8x1xf32>
      %cst_88 = arith.constant 9.99999974E-6 : f32
      %214 = vector.broadcast %cst_88 : f32 to vector<8x1xf32>
      %215 = arith.addf %213, %214 : vector<8x1xf32>
      %216 = math.rsqrt %215 : vector<8x1xf32>
      %217 = vector.broadcast %216 : vector<8x1xf32> to vector<8x128xf32>
      %218 = arith.mulf %208, %217 : vector<8x128xf32>
      %219 = vector.broadcast %201 : vector<1x128xf32> to vector<8x128xf32>
      %220 = arith.mulf %218, %219 : vector<8x128xf32>
      %221 = vector.broadcast %202 : vector<1x128xf32> to vector<8x128xf32>
      %222 = arith.addf %220, %221 : vector<8x128xf32>
      %c0_89 = arith.constant 0 : index
      %c0_90 = arith.constant 0 : index
      %223 = vector.load %arg16[%c0_89, %c0_90] : memref<8x128xf32, #tpu.memory_space<vmem>>, vector<8x128xf32>
      tpu.vector_store %arg16[%c0_89, %c0_90], %222 {strides = array<i32>} : memref<8x128xf32, #tpu.memory_space<vmem>>, vector<8x128xf32>,
    } else {
    }
    return
  }
  func.func @transform_0(%arg0: i32) -> (i32, i32) {
    %c0_i32 = arith.constant 0 : i32
    %c0_i32_0 = arith.constant 0 : i32
    %c0_i32_1 = arith.constant 0 : i32
    return %c0_i32, %c0_i32_0 : i32, i32
  }
  func.func @transform_1(%arg0: i32) -> (i32, i32, i32) {
    %c0_i32 = arith.constant 0 : i32
    %c0_i32_0 = arith.constant 0 : i32
    %c0_i32_1 = arith.constant 0 : i32
    return %arg0, %c0_i32, %c0_i32_0 : i32, i32, i32
  }
  func.func @transform_2(%arg0: i32) -> (i32, i32, i32) {
    %c0_i32 = arith.constant 0 : i32
    %c0_i32_0 = arith.constant 0 : i32
    %c0_i32_1 = arith.constant 0 : i32
    return %arg0, %c0_i32, %c0_i32_0 : i32, i32, i32
  }
  func.func @transform_3(%arg0: i32) -> (i32, i32, i32) {
    %c0_i32 = arith.constant 0 : i32
    %c0_i32_0 = arith.constant 0 : i32
    %c0_i32_1 = arith.constant 0 : i32
    return %arg0, %c0_i32, %c0_i32_0 : i32, i32, i32
  }
  func.func @transform_4(%arg0: i32) -> (i32, i32, i32) {
    %c0_i32 = arith.constant 0 : i32
    %c0_i32_0 = arith.constant 0 : i32
    %c0_i32_1 = arith.constant 0 : i32
    return %arg0, %c0_i32, %c0_i32_0 : i32, i32, i32
  }
  func.func @transform_5(%arg0: i32) -> (i32, i32, i32) {
    %c0_i32 = arith.constant 0 : i32
    %c0_i32_0 = arith.constant 0 : i32
    %c0_i32_1 = arith.constant 0 : i32
    return %arg0, %c0_i32, %c0_i32_0 : i32, i32, i32
  }
  func.func @transform_6(%arg0: i32) -> (i32, i32, i32) {
    %c0_i32 = arith.constant 0 : i32
    %c0_i32_0 = arith.constant 0 : i32
    %c0_i32_1 = arith.constant 0 : i32
    return %arg0, %c0_i32, %c0_i32_0 : i32, i32, i32
  }
  func.func @transform_7(%arg0: i32) -> (i32, i32, i32) {
    %c0_i32 = arith.constant 0 : i32
    %c0_i32_0 = arith.constant 0 : i32
    %c0_i32_1 = arith.constant 0 : i32
    return %arg0, %c0_i32, %c0_i32_0 : i32, i32, i32
  }
  func.func @transform_8(%arg0: i32) -> (i32, i32, i32) {
    %c0_i32 = arith.constant 0 : i32
    %c0_i32_0 = arith.constant 0 : i32
    %c0_i32_1 = arith.constant 0 : i32
    return %arg0, %c0_i32, %c0_i32_0 : i32, i32, i32
  }
  func.func @transform_9(%arg0: i32) -> (i32, i32, i32) {
    %c0_i32 = arith.constant 0 : i32
    %c0_i32_0 = arith.constant 0 : i32
    %c0_i32_1 = arith.constant 0 : i32
    return %arg0, %c0_i32, %c0_i32_0 : i32, i32, i32
  }
  func.func @transform_10(%arg0: i32) -> (i32, i32, i32) {
    %c0_i32 = arith.constant 0 : i32
    %c0_i32_0 = arith.constant 0 : i32
    %c0_i32_1 = arith.constant 0 : i32
    return %arg0, %c0_i32, %c0_i32_0 : i32, i32, i32
  }
  func.func @transform_11(%arg0: i32) -> (i32, i32, i32) {
    %c0_i32 = arith.constant 0 : i32
    %c0_i32_0 = arith.constant 0 : i32
    %c0_i32_1 = arith.constant 0 : i32
    return %arg0, %c0_i32, %c0_i32_0 : i32, i32, i32
  }
  func.func @transform_12(%arg0: i32) -> (i32, i32, i32) {
    %c0_i32 = arith.constant 0 : i32
    %c0_i32_0 = arith.constant 0 : i32
    %c0_i32_1 = arith.constant 0 : i32
    return %arg0, %c0_i32, %c0_i32_0 : i32, i32, i32
  }
  func.func @transform_13(%arg0: i32) -> (i32, i32) {
    %c0_i32 = arith.constant 0 : i32
    %c0_i32_0 = arith.constant 0 : i32
    %c0_i32_1 = arith.constant 0 : i32
    return %c0_i32, %c0_i32_0 : i32, i32
  }
  func.func @transform_14(%arg0: i32) -> (i32, i32) {
    %c0_i32 = arith.constant 0 : i32
    %c0_i32_0 = arith.constant 0 : i32
    %c0_i32_1 = arith.constant 0 : i32
    return %c0_i32, %c0_i32_0 : i32, i32
  }
  func.func @transform_15(%arg0: i32) -> (i32, i32) {
    %c0_i32 = arith.constant 0 : i32
    %c0_i32_0 = arith.constant 0 : i32
    %c0_i32_1 = arith.constant 0 : i32
    return %c0_i32, %c0_i32_0 : i32, i32
  }
}

</mosaic_0001>

<llo_original>
// kernel: gpt2_forward.1
$region0: #{gpt2_forward.1}
  #allocation0 [shape = 'u32[]', space=smem, size = 0x4, offset = 0x4, fixed_abs, tag = 'smem constant byte address 0x4 - core index']
  #allocation1 [shape = 'u32[144,128]{1,0:T(1,128)}', space=vmem, size = 0x12000, scoped, tag = 'internal scratch']
  #allocation2 [shape = 'f32[8,128]{1,0:T(8,128)}', space=vmem, size = 0x1000, scoped, tag = 'scratch operand']
  %s0 = inlined_call_operand.vmem [shape: f32[8,128], index: 0, kind: input, shape index: {}]
  %s1 = inlined_call_operand.vmem [shape: f32[2,1,128], index: 1, kind: input, shape index: {}]
  %s2 = inlined_call_operand.vmem [shape: f32[2,1,128], index: 2, kind: input, shape index: {}]
  %s3 = inlined_call_operand.hbm [shape: bf16[2,128,384], index: 3, kind: input, shape index: {}]
  %s4 = inlined_call_operand.vmem [shape: f32[2,1,384], index: 4, kind: input, shape index: {}]
  %s5 = inlined_call_operand.vmem [shape: bf16[2,128,128], index: 5, kind: input, shape index: {}]
  %s6 = inlined_call_operand.vmem [shape: f32[2,1,128], index: 6, kind: input, shape index: {}]
  %s7 = inlined_call_operand.vmem [shape: f32[2,1,128], index: 7, kind: input, shape index: {}]
  %s8 = inlined_call_operand.vmem [shape: f32[2,1,128], index: 8, kind: input, shape index: {}]
  %s9 = inlined_call_operand.hbm [shape: bf16[2,128,512], index: 9, kind: input, shape index: {}]
  %s10 = inlined_call_operand.vmem [shape: f32[2,1,512], index: 10, kind: input, shape index: {}]
  %s11 = inlined_call_operand.hbm [shape: bf16[2,512,128], index: 11, kind: input, shape index: {}]
  %s12 = inlined_call_operand.vmem [shape: f32[2,1,128], index: 12, kind: input, shape index: {}]
  %s13 = inlined_call_operand.vmem [shape: f32[1,128], index: 13, kind: input, shape index: {}]
  %s14 = inlined_call_operand.vmem [shape: f32[1,128], index: 14, kind: input, shape index: {}]
  %s15 = inlined_call_operand.hbm [shape: f32[8,128], index: 15, kind: output, shape index: {}]
  %s16 = sld [smem:[#allocation0]]
  $region113: #{gpt2_forward.1} parent=0
    _
  %s18 = ssub.s32 1, %s16
  %s19 = scalar_select 0, %s18, %s16
  $region1: #{gpt2_forward.1} parent=0
    #allocation3 [shape = 'u8[196608]{0}', space=vmem, size = 0x30000, scoped, tag = 'input window, operand 3']
    #allocation4 [shape = 's32[2]{0}', space=sflag, size = 0x8, scoped, tag = 'scoped memory for gpt2_forward.1']
    #allocation5 [shape = 's32[2]{0}', space=sflag, size = 0x8, scoped, tag = 'scoped memory for gpt2_forward.1']
    #allocation6 [shape = 'u8[262144]{0}', space=vmem, size = 0x40000, scoped, tag = 'input window, operand 9']
    #allocation7 [shape = 's32[2]{0}', space=sflag, size = 0x8, scoped, tag = 'scoped memory for gpt2_forward.1']
    #allocation8 [shape = 'u8[262144]{0}', space=vmem, size = 0x40000, scoped, tag = 'input window, operand 11']
    #allocation9 [shape = 'u8[4096]{0}', space=vmem, size = 0x1000, scoped, tag = 'output window, operand 0, single buffered']
    %20 = vsyncpa [#allocation4], 0
    %s21 = scalar_lea.sflag [#allocation4], 1
    %22 = vsyncpa %s21, 0
    %23 = vsyncpa [#allocation7], 0
    %s24 = scalar_lea.sflag [#allocation7], 1
    %25 = vsyncpa %s24, 0
    %26 = vsyncpa [#allocation5], 0
    loop: start=0, step=1, limit=4
    $region2: #{gpt2_forward.1} parent=1 // loop_pre_header
      _
    $region3: #{gpt2_forward.1} parent=1 // loop_header
      %s28 = sphi 0, %s32
      %p29 = scmp.ge.s32.totalorder %s28, 4
      %s36 = sphi 0, %s36
      %s38 = sphi 0, %s36
      %s39 = sphi 0, %s38
      %s53 = sphi 0, %s39
      %s59 = sphi 0, %s61
      %s62 = sphi 0, %s59
      %s63 = sphi 0, %s62
      %s79 = sphi 0, %s63
      %s85 = sphi 0, %s87
      %s88 = sphi 0, %s85
      %s89 = sphi 0, %s88
      %s105 = sphi 0, %s89
      %s111 = sphi 0, %s113
      %s114 = sphi 0, %s111
      %s115 = sphi 0, %s114
      %s131 = sphi 0, %s115
      %s137 = sphi 0, %s139
      %s140 = sphi 0, %s137
      %s141 = sphi 0, %s140
      %s157 = sphi 0, %s141
      %s163 = sphi 0, %s165
      %s166 = sphi 0, %s163
      %s167 = sphi 0, %s166
      %s183 = sphi 0, %s167
      %s189 = sphi 0, %s191
      %s192 = sphi 0, %s189
      %s193 = sphi 0, %s192
      %s209 = sphi 0, %s193
      %s215 = sphi 0, %s217
      %s218 = sphi 0, %s215
      %s219 = sphi 0, %s218
      %s235 = sphi 0, %s219
      %s241 = sphi 0, %s243
      %s244 = sphi 0, %s241
      %s245 = sphi 0, %s244
      %s261 = sphi 0, %s245
      %s267 = sphi 0, %s269
      %s270 = sphi 0, %s267
      %s271 = sphi 0, %s270
      %s287 = sphi 0, %s271
      %s293 = sphi 0, %s295
      %s296 = sphi 0, %s293
      %s297 = sphi 0, %s296
      %s313 = sphi 0, %s297
      %s319 = sphi 0, %s321
      %s322 = sphi 0, %s319
      %s323 = sphi 0, %s322
      %s339 = sphi 0, %s323
      %s345 = sphi 0, %s347
      %s348 = sphi 0, %s345
      %s349 = sphi 0, %s348
      %s365 = sphi 0, %s349
      %s369 = sphi 0, %s369
      %s371 = sphi 0, %s369
      %s372 = sphi 0, %s371
      %s386 = sphi 0, %s372
      %s390 = sphi 0, %s390
      %s392 = sphi 0, %s390
      %s393 = sphi 0, %s392
      %s407 = sphi 0, %s393
      %s411 = sphi 0, %s411
      %s413 = sphi 0, %s411
      %s414 = sphi 0, %s413
      %s428 = sphi 0, %s414
    $region4: #{gpt2_forward.1} parent=1 // loop_header_branch
      %31 = sbr.rel (%p29) target = $region8
    $region5: #{gpt2_forward.1} parent=1 // loop_body
      %s33 = ssub.s32 %s28, 1
      %s34 = ssub.s32 %s28, 2
      %s35 = sadd.s32 %s28, 1
      %s37 = sadd.s32 %s36, 1
      %p40 = scmp.eq.s32.totalorder %s28, 1
      %p41 = scmp.ne.s32.totalorder %s36, %s38
      %p42 = scmp.eq.s32.totalorder %s28, 0
      %p43 = por %p41, %p42
      %p44 = scmp.ne.s32.totalorder %s36, %s38
      %p45 = scmp.eq.s32.totalorder %s33, 1
      %p46 = por %p44, %p45
      %p47 = scmp.ne.s32.totalorder %s38, %s39
      %p48 = scmp.eq.s32.totalorder %s33, 0
      %p49 = por %p47, %p48
      %p50 = scmp.ne.s32.totalorder %s38, %s39
      %p51 = scmp.eq.s32.totalorder %s34, 1
      %p52 = por %p50, %p51
      %p54 = scmp.ne.s32.totalorder %s39, %s53
      %p55 = scmp.eq.s32.totalorder %s34, 0
      %p56 = por %p54, %p55
      %s57 = ssub.s32 %s28, %s35
      %p58 = scmp.eq.s32.totalorder %s57, 0
      %s60 = sadd.s32 %s59, 1
      %s61 = scalar_select %p58, %s59, %s60
      %p64 = pneg %p58
      %p65 = scmp.eq.s32.totalorder %s28, 1
      %p66 = por %p64, %p65
      %p67 = scmp.ne.s32.totalorder %s59, %s62
      %p68 = scmp.eq.s32.totalorder %s28, 0
      %p69 = por %p67, %p68
      %p70 = scmp.ne.s32.totalorder %s59, %s62
      %p71 = scmp.eq.s32.totalorder %s33, 1
      %p72 = por %p70, %p71
      %p73 = scmp.ne.s32.totalorder %s62, %s63
      %p74 = scmp.eq.s32.totalorder %s33, 0
      %p75 = por %p73, %p74
      %p76 = scmp.ne.s32.totalorder %s62, %s63
      %p77 = scmp.eq.s32.totalorder %s34, 1
      %p78 = por %p76, %p77
      %p80 = scmp.ne.s32.totalorder %s63, %s79
      %p81 = scmp.eq.s32.totalorder %s34, 0
      %p82 = por %p80, %p81
      %s83 = ssub.s32 %s28, %s35
      %p84 = scmp.eq.s32.totalorder %s83, 0
      %s86 = sadd.s32 %s85, 1
      %s87 = scalar_select %p84, %s85, %s86
      %p90 = pneg %p84
      %p91 = scmp.eq.s32.totalorder %s28, 1
      %p92 = por %p90, %p91
      %p93 = scmp.ne.s32.totalorder %s85, %s88
      %p94 = scmp.eq.s32.totalorder %s28, 0
      %p95 = por %p93, %p94
      %p96 = scmp.ne.s32.totalorder %s85, %s88
      %p97 = scmp.eq.s32.totalorder %s33, 1
      %p98 = por %p96, %p97
      %p99 = scmp.ne.s32.totalorder %s88, %s89
      %p100 = scmp.eq.s32.totalorder %s33, 0
      %p101 = por %p99, %p100
      %p102 = scmp.ne.s32.totalorder %s88, %s89
      %p103 = scmp.eq.s32.totalorder %s34, 1
      %p104 = por %p102, %p103
      %p106 = scmp.ne.s32.totalorder %s89, %s105
      %p107 = scmp.eq.s32.totalorder %s34, 0
      %p108 = por %p106, %p107
      %s109 = ssub.s32 %s28, %s35
      %p110 = scmp.eq.s32.totalorder %s109, 0
      %s112 = sadd.s32 %s111, 1
      %s113 = scalar_select %p110, %s111, %s112
      %p116 = pneg %p110
      %p117 = scmp.eq.s32.totalorder %s28, 1
      %p118 = por %p116, %p117
      %p119 = scmp.ne.s32.totalorder %s111, %s114
      %p120 = scmp.eq.s32.totalorder %s28, 0
      %p121 = por %p119, %p120
      %p122 = scmp.ne.s32.totalorder %s111, %s114
      %p123 = scmp.eq.s32.totalorder %s33, 1
      %p124 = por %p122, %p123
      %p125 = scmp.ne.s32.totalorder %s114, %s115
      %p126 = scmp.eq.s32.totalorder %s33, 0
      %p127 = por %p125, %p126
      %p128 = scmp.ne.s32.totalorder %s114, %s115
      %p129 = scmp.eq.s32.totalorder %s34, 1
      %p130 = por %p128, %p129
      %p132 = scmp.ne.s32.totalorder %s115, %s131
      %p133 = scmp.eq.s32.totalorder %s34, 0
      %p134 = por %p132, %p133
      %s135 = ssub.s32 %s28, %s35
      %p136 = scmp.eq.s32.totalorder %s135, 0
      %s138 = sadd.s32 %s137, 1
      %s139 = scalar_select %p136, %s137, %s138
      %p142 = pneg %p136
      %p143 = scmp.eq.s32.totalorder %s28, 1
      %p144 = por %p142, %p143
      %p145 = scmp.ne.s32.totalorder %s137, %s140
      %p146 = scmp.eq.s32.totalorder %s28, 0
      %p147 = por %p145, %p146
      %p148 = scmp.ne.s32.totalorder %s137, %s140
      %p149 = scmp.eq.s32.totalorder %s33, 1
      %p150 = por %p148, %p149
      %p151 = scmp.ne.s32.totalorder %s140, %s141
      %p152 = scmp.eq.s32.totalorder %s33, 0
      %p153 = por %p151, %p152
      %p154 = scmp.ne.s32.totalorder %s140, %s141
      %p155 = scmp.eq.s32.totalorder %s34, 1
      %p156 = por %p154, %p155
      %p158 = scmp.ne.s32.totalorder %s141, %s157
      %p159 = scmp.eq.s32.totalorder %s34, 0
      %p160 = por %p158, %p159
      %s161 = ssub.s32 %s28, %s35
      %p162 = scmp.eq.s32.totalorder %s161, 0
      %s164 = sadd.s32 %s163, 1
      %s165 = scalar_select %p162, %s163, %s164
      %p168 = pneg %p162
      %p169 = scmp.eq.s32.totalorder %s28, 1
      %p170 = por %p168, %p169
      %p171 = scmp.ne.s32.totalorder %s163, %s166
      %p172 = scmp.eq.s32.totalorder %s28, 0
      %p173 = por %p171, %p172
      %p174 = scmp.ne.s32.totalorder %s163, %s166
      %p175 = scmp.eq.s32.totalorder %s33, 1
      %p176 = por %p174, %p175
      %p177 = scmp.ne.s32.totalorder %s166, %s167
      %p178 = scmp.eq.s32.totalorder %s33, 0
      %p179 = por %p177, %p178
      %p180 = scmp.ne.s32.totalorder %s166, %s167
      %p181 = scmp.eq.s32.totalorder %s34, 1
      %p182 = por %p180, %p181
      %p184 = scmp.ne.s32.totalorder %s167, %s183
      %p185 = scmp.eq.s32.totalorder %s34, 0
      %p186 = por %p184, %p185
      %s187 = ssub.s32 %s28, %s35
      %p188 = scmp.eq.s32.totalorder %s187, 0
      %s190 = sadd.s32 %s189, 1
      %s191 = scalar_select %p188, %s189, %s190
      %p194 = pneg %p188
      %p195 = scmp.eq.s32.totalorder %s28, 1
      %p196 = por %p194, %p195
      %p197 = scmp.ne.s32.totalorder %s189, %s192
      %p198 = scmp.eq.s32.totalorder %s28, 0
      %p199 = por %p197, %p198
      %p200 = scmp.ne.s32.totalorder %s189, %s192
      %p201 = scmp.eq.s32.totalorder %s33, 1
      %p202 = por %p200, %p201
      %p203 = scmp.ne.s32.totalorder %s192, %s193
      %p204 = scmp.eq.s32.totalorder %s33, 0
      %p205 = por %p203, %p204
      %p206 = scmp.ne.s32.totalorder %s192, %s193
      %p207 = scmp.eq.s32.totalorder %s34, 1
      %p208 = por %p206, %p207
      %p210 = scmp.ne.s32.totalorder %s193, %s209
      %p211 = scmp.eq.s32.totalorder %s34, 0
      %p212 = por %p210, %p211
      %s213 = ssub.s32 %s28, %s35
      %p214 = scmp.eq.s32.totalorder %s213, 0
      %s216 = sadd.s32 %s215, 1
      %s217 = scalar_select %p214, %s215, %s216
      %p220 = pneg %p214
      %p221 = scmp.eq.s32.totalorder %s28, 1
      %p222 = por %p220, %p221
      %p223 = scmp.ne.s32.totalorder %s215, %s218
      %p224 = scmp.eq.s32.totalorder %s28, 0
      %p225 = por %p223, %p224
      %p226 = scmp.ne.s32.totalorder %s215, %s218
      %p227 = scmp.eq.s32.totalorder %s33, 1
      %p228 = por %p226, %p227
      %p229 = scmp.ne.s32.totalorder %s218, %s219
      %p230 = scmp.eq.s32.totalorder %s33, 0
      %p231 = por %p229, %p230
      %p232 = scmp.ne.s32.totalorder %s218, %s219
      %p233 = scmp.eq.s32.totalorder %s34, 1
      %p234 = por %p232, %p233
      %p236 = scmp.ne.s32.totalorder %s219, %s235
      %p237 = scmp.eq.s32.totalorder %s34, 0
      %p238 = por %p236, %p237
      %s239 = ssub.s32 %s28, %s35
      %p240 = scmp.eq.s32.totalorder %s239, 0
      %s242 = sadd.s32 %s241, 1
      %s243 = scalar_select %p240, %s241, %s242
      %p246 = pneg %p240
      %p247 = scmp.eq.s32.totalorder %s28, 1
      %p248 = por %p246, %p247
      %p249 = scmp.ne.s32.totalorder %s241, %s244
      %p250 = scmp.eq.s32.totalorder %s28, 0
      %p251 = por %p249, %p250
      %p252 = scmp.ne.s32.totalorder %s241, %s244
      %p253 = scmp.eq.s32.totalorder %s33, 1
      %p254 = por %p252, %p253
      %p255 = scmp.ne.s32.totalorder %s244, %s245
      %p256 = scmp.eq.s32.totalorder %s33, 0
      %p257 = por %p255, %p256
      %p258 = scmp.ne.s32.totalorder %s244, %s245
      %p259 = scmp.eq.s32.totalorder %s34, 1
      %p260 = por %p258, %p259
      %p262 = scmp.ne.s32.totalorder %s245, %s261
      %p263 = scmp.eq.s32.totalorder %s34, 0
      %p264 = por %p262, %p263
      %s265 = ssub.s32 %s28, %s35
      %p266 = scmp.eq.s32.totalorder %s265, 0
      %s268 = sadd.s32 %s267, 1
      %s269 = scalar_select %p266, %s267, %s268
      %p272 = pneg %p266
      %p273 = scmp.eq.s32.totalorder %s28, 1
      %p274 = por %p272, %p273
      %p275 = scmp.ne.s32.totalorder %s267, %s270
      %p276 = scmp.eq.s32.totalorder %s28, 0
      %p277 = por %p275, %p276
      %p278 = scmp.ne.s32.totalorder %s267, %s270
      %p279 = scmp.eq.s32.totalorder %s33, 1
      %p280 = por %p278, %p279
      %p281 = scmp.ne.s32.totalorder %s270, %s271
      %p282 = scmp.eq.s32.totalorder %s33, 0
      %p283 = por %p281, %p282
      %p284 = scmp.ne.s32.totalorder %s270, %s271
      %p285 = scmp.eq.s32.totalorder %s34, 1
      %p286 = por %p284, %p285
      %p288 = scmp.ne.s32.totalorder %s271, %s287
      %p289 = scmp.eq.s32.totalorder %s34, 0
      %p290 = por %p288, %p289
      %s291 = ssub.s32 %s28, %s35
      %p292 = scmp.eq.s32.totalorder %s291, 0
      %s294 = sadd.s32 %s293, 1
      %s295 = scalar_select %p292, %s293, %s294
      %p298 = pneg %p292
      %p299 = scmp.eq.s32.totalorder %s28, 1
      %p300 = por %p298, %p299
      %p301 = scmp.ne.s32.totalorder %s293, %s296
      %p302 = scmp.eq.s32.totalorder %s28, 0
      %p303 = por %p301, %p302
      %p304 = scmp.ne.s32.totalorder %s293, %s296
      %p305 = scmp.eq.s32.totalorder %s33, 1
      %p306 = por %p304, %p305
      %p307 = scmp.ne.s32.totalorder %s296, %s297
      %p308 = scmp.eq.s32.totalorder %s33, 0
      %p309 = por %p307, %p308
      %p310 = scmp.ne.s32.totalorder %s296, %s297
      %p311 = scmp.eq.s32.totalorder %s34, 1
      %p312 = por %p310, %p311
      %p314 = scmp.ne.s32.totalorder %s297, %s313
      %p315 = scmp.eq.s32.totalorder %s34, 0
      %p316 = por %p314, %p315
      %s317 = ssub.s32 %s28, %s35
      %p318 = scmp.eq.s32.totalorder %s317, 0
      %s320 = sadd.s32 %s319, 1
      %s321 = scalar_select %p318, %s319, %s320
      %p324 = pneg %p318
      %p325 = scmp.eq.s32.totalorder %s28, 1
      %p326 = por %p324, %p325
      %p327 = scmp.ne.s32.totalorder %s319, %s322
      %p328 = scmp.eq.s32.totalorder %s28, 0
      %p329 = por %p327, %p328
      %p330 = scmp.ne.s32.totalorder %s319, %s322
      %p331 = scmp.eq.s32.totalorder %s33, 1
      %p332 = por %p330, %p331
      %p333 = scmp.ne.s32.totalorder %s322, %s323
      %p334 = scmp.eq.s32.totalorder %s33, 0
      %p335 = por %p333, %p334
      %p336 = scmp.ne.s32.totalorder %s322, %s323
      %p337 = scmp.eq.s32.totalorder %s34, 1
      %p338 = por %p336, %p337
      %p340 = scmp.ne.s32.totalorder %s323, %s339
      %p341 = scmp.eq.s32.totalorder %s34, 0
      %p342 = por %p340, %p341
      %s343 = ssub.s32 %s28, %s35
      %p344 = scmp.eq.s32.totalorder %s343, 0
      %s346 = sadd.s32 %s345, 1
      %s347 = scalar_select %p344, %s345, %s346
      %p350 = pneg %p344
      %p351 = scmp.eq.s32.totalorder %s28, 1
      %p352 = por %p350, %p351
      %p353 = scmp.ne.s32.totalorder %s345, %s348
      %p354 = scmp.eq.s32.totalorder %s28, 0
      %p355 = por %p353, %p354
      %p356 = scmp.ne.s32.totalorder %s345, %s348
      %p357 = scmp.eq.s32.totalorder %s33, 1
      %p358 = por %p356, %p357
      %p359 = scmp.ne.s32.totalorder %s348, %s349
      %p360 = scmp.eq.s32.totalorder %s33, 0
      %p361 = por %p359, %p360
      %p362 = scmp.ne.s32.totalorder %s348, %s349
      %p363 = scmp.eq.s32.totalorder %s34, 1
      %p364 = por %p362, %p363
      %p366 = scmp.ne.s32.totalorder %s349, %s365
      %p367 = scmp.eq.s32.totalorder %s34, 0
      %p368 = por %p366, %p367
      %s370 = sadd.s32 %s369, 1
      %p373 = scmp.eq.s32.totalorder %s28, 1
      %p374 = scmp.ne.s32.totalorder %s369, %s371
      %p375 = scmp.eq.s32.totalorder %s28, 0
      %p376 = por %p374, %p375
      %p377 = scmp.ne.s32.totalorder %s369, %s371
      %p378 = scmp.eq.s32.totalorder %s33, 1
      %p379 = por %p377, %p378
      %p380 = scmp.ne.s32.totalorder %s371, %s372
      %p381 = scmp.eq.s32.totalorder %s33, 0
      %p382 = por %p380, %p381
      %p383 = scmp.ne.s32.totalorder %s371, %s372
      %p384 = scmp.eq.s32.totalorder %s34, 1
      %p385 = por %p383, %p384
      %p387 = scmp.ne.s32.totalorder %s372, %s386
      %p388 = scmp.eq.s32.totalorder %s34, 0
      %p389 = por %p387, %p388
      %s391 = sadd.s32 %s390, 1
      %p394 = scmp.eq.s32.totalorder %s28, 1
      %p395 = scmp.ne.s32.totalorder %s390, %s392
      %p396 = scmp.eq.s32.totalorder %s28, 0
      %p397 = por %p395, %p396
      %p398 = scmp.ne.s32.totalorder %s390, %s392
      %p399 = scmp.eq.s32.totalorder %s33, 1
      %p400 = por %p398, %p399
      %p401 = scmp.ne.s32.totalorder %s392, %s393
      %p402 = scmp.eq.s32.totalorder %s33, 0
      %p403 = por %p401, %p402
      %p404 = scmp.ne.s32.totalorder %s392, %s393
      %p405 = scmp.eq.s32.totalorder %s34, 1
      %p406 = por %p404, %p405
      %p408 = scmp.ne.s32.totalorder %s393, %s407
      %p409 = scmp.eq.s32.totalorder %s34, 0
      %p410 = por %p408, %p409
      %s412 = sadd.s32 %s411, 1
      %p415 = scmp.eq.s32.totalorder %s28, 1
      %p416 = scmp.ne.s32.totalorder %s411, %s413
      %p417 = scmp.eq.s32.totalorder %s28, 0
      %p418 = por %p416, %p417
      %p419 = scmp.ne.s32.totalorder %s411, %s413
      %p420 = scmp.eq.s32.totalorder %s33, 1
      %p421 = por %p419, %p420
      %p422 = scmp.ne.s32.totalorder %s413, %s414
      %p423 = scmp.eq.s32.totalorder %s33, 0
      %p424 = por %p422, %p423
      %p425 = scmp.ne.s32.totalorder %s413, %s414
      %p426 = scmp.eq.s32.totalorder %s34, 1
      %p427 = por %p425, %p426
      %p429 = scmp.ne.s32.totalorder %s414, %s428
      %p430 = scmp.eq.s32.totalorder %s34, 0
      %p431 = por %p429, %p430
      %p432 = scmp.le.s32.totalorder 1, %s28
      %p433 = scmp.lt.s32.totalorder %s28, 3
      %p434 = pnand %p432, %p433
      %p435 = pneg %p434
      // Predicated region
      $region9: #{gpt2_forward.1} parent=5 // pred_check
        _
      $region10: #{gpt2_forward.1} parent=5 // pred_check_branch
        %437 = sbr.rel (%p434) target = $region12
      $region11: #{gpt2_forward.1} parent=5 // pred_region
        %s438 = ssub.s32 %s28, 1
        // Predicated region
        $region13: #{gpt2_forward.1} parent=11 // pred_check
          %p439 = pneg %p49
        $region14: #{gpt2_forward.1} parent=11 // pred_check_branch
          %441 = sbr.rel (%p439) target = $region16
        $region15: #{gpt2_forward.1} parent=11 // pred_region
          _
        $region16: #{gpt2_forward.1} parent=11 // pred_fallthru
          _
        // Predicated region
        $region17: #{gpt2_forward.1} parent=11 // pred_check
          %p442 = pneg %p382
        $region18: #{gpt2_forward.1} parent=11 // pred_check_branch
          %444 = sbr.rel (%p442) target = $region20
        $region19: #{gpt2_forward.1} parent=11 // pred_region
          _
        $region20: #{gpt2_forward.1} parent=11 // pred_fallthru
          _
        // Predicated region
        $region21: #{gpt2_forward.1} parent=11 // pred_check
          %p445 = pneg %p403
        $region22: #{gpt2_forward.1} parent=11 // pred_check_branch
          %447 = sbr.rel (%p445) target = $region24
        $region23: #{gpt2_forward.1} parent=11 // pred_region
          _
        $region24: #{gpt2_forward.1} parent=11 // pred_fallthru
          _
      $region12: #{gpt2_forward.1} parent=5 // pred_fallthru
        _
      %p448 = scmp.lt.s32.totalorder %s28, 2
      // Predicated region
      $region25: #{gpt2_forward.1} parent=5 // pred_check
        %p449 = pneg %p448
      $region26: #{gpt2_forward.1} parent=5 // pred_check_branch
        %451 = sbr.rel (%p449) target = $region28
      $region27: #{gpt2_forward.1} parent=5 // pred_region
        // Predicated region
        $region29: #{gpt2_forward.1} parent=27 // pred_check
          %p452 = pneg %p69
        $region30: #{gpt2_forward.1} parent=27 // pred_check_branch
          %454 = sbr.rel (%p452) target = $region32
        $region31: #{gpt2_forward.1} parent=27 // pred_region
          %p455 = scmp.lt.s32.totalorder %s28, 1
          %s456 = scalar_select %p455, %s28, 1
          %s457 = scalar_lea.vmem %s1, %s456
        $region32: #{gpt2_forward.1} parent=27 // pred_fallthru
          _
        // Predicated region
        $region33: #{gpt2_forward.1} parent=27 // pred_check
          %p458 = pneg %p95
        $region34: #{gpt2_forward.1} parent=27 // pred_check_branch
          %460 = sbr.rel (%p458) target = $region36
        $region35: #{gpt2_forward.1} parent=27 // pred_region
          %p461 = scmp.lt.s32.totalorder %s28, 1
          %s462 = scalar_select %p461, %s28, 1
          %s463 = scalar_lea.vmem %s2, %s462
        $region36: #{gpt2_forward.1} parent=27 // pred_fallthru
          _
        // Predicated region
        $region37: #{gpt2_forward.1} parent=27 // pred_check
          %p464 = pneg %p121
        $region38: #{gpt2_forward.1} parent=27 // pred_check_branch
          %466 = sbr.rel (%p464) target = $region40
        $region39: #{gpt2_forward.1} parent=27 // pred_region
          %s467 = sand.u32 %s111, 1
          %s468 = scalar_lea.sflag [#allocation4], %s467
          %s469 = sand.u32 %s111, 1
          %s470 = smul.addr %s469, 192
          %s471 = scalar_lea.vmem [#allocation3], %s470
          %s473 = ssub.s32 3072, 3072
          %474 = vsyncadd %s468, %s473
          %s475 = smul.addr %s28, 48
          %s476 = smul.addr %s475, 64
          %s477 = scalar_lea.hbm %s3, %s476
          %s478 = sshll.u32 %s471, 4
          %s479 = int_to_ptr.vmem [resolvable:$true] %s478
          %484 = dma.hbm_to_vmem [thread:$0]  %s477, 3072, %s479, %s468, 192, 192, 12
        $region40: #{gpt2_forward.1} parent=27 // pred_fallthru
          _
        // Predicated region
        $region41: #{gpt2_forward.1} parent=27 // pred_check
          %p485 = pneg %p147
        $region42: #{gpt2_forward.1} parent=27 // pred_check_branch
          %487 = sbr.rel (%p485) target = $region44
        $region43: #{gpt2_forward.1} parent=27 // pred_region
          %p488 = scmp.lt.s32.totalorder %s28, 1
          %s489 = scalar_select %p488, %s28, 1
          %s490 = smul.addr %s489, 3
          %s491 = scalar_lea.vmem %s4, %s490
        $region44: #{gpt2_forward.1} parent=27 // pred_fallthru
          _
        // Predicated region
        $region45: #{gpt2_forward.1} parent=27 // pred_check
          %p492 = pneg %p173
        $region46: #{gpt2_forward.1} parent=27 // pred_check_branch
          %494 = sbr.rel (%p492) target = $region48
        $region47: #{gpt2_forward.1} parent=27 // pred_region
          %p495 = scmp.lt.s32.totalorder %s28, 1
          %s496 = scalar_select %p495, %s28, 1
          %s497 = smul.addr %s496, 16
          %s498 = smul.addr %s497, 4
          %s499 = scalar_lea.vmem %s5, %s498
        $region48: #{gpt2_forward.1} parent=27 // pred_fallthru
          _
        // Predicated region
        $region49: #{gpt2_forward.1} parent=27 // pred_check
          %p500 = pneg %p199
        $region50: #{gpt2_forward.1} parent=27 // pred_check_branch
          %502 = sbr.rel (%p500) target = $region52
        $region51: #{gpt2_forward.1} parent=27 // pred_region
          %p503 = scmp.lt.s32.totalorder %s28, 1
          %s504 = scalar_select %p503, %s28, 1
          %s505 = scalar_lea.vmem %s6, %s504
        $region52: #{gpt2_forward.1} parent=27 // pred_fallthru
          _
        // Predicated region
        $region53: #{gpt2_forward.1} parent=27 // pred_check
          %p506 = pneg %p225
        $region54: #{gpt2_forward.1} parent=27 // pred_check_branch
          %508 = sbr.rel (%p506) target = $region56
        $region55: #{gpt2_forward.1} parent=27 // pred_region
          %p509 = scmp.lt.s32.totalorder %s28, 1
          %s510 = scalar_select %p509, %s28, 1
          %s511 = scalar_lea.vmem %s7, %s510
        $region56: #{gpt2_forward.1} parent=27 // pred_fallthru
          _
        // Predicated region
        $region57: #{gpt2_forward.1} parent=27 // pred_check
          %p512 = pneg %p251
        $region58: #{gpt2_forward.1} parent=27 // pred_check_branch
          %514 = sbr.rel (%p512) target = $region60
        $region59: #{gpt2_forward.1} parent=27 // pred_region
          %p515 = scmp.lt.s32.totalorder %s28, 1
          %s516 = scalar_select %p515, %s28, 1
          %s517 = scalar_lea.vmem %s8, %s516
        $region60: #{gpt2_forward.1} parent=27 // pred_fallthru
          _
        // Predicated region
        $region61: #{gpt2_forward.1} parent=27 // pred_check
          %p518 = pneg %p277
        $region62: #{gpt2_forward.1} parent=27 // pred_check_branch
          %520 = sbr.rel (%p518) target = $region64
        $region63: #{gpt2_forward.1} parent=27 // pred_region
          %s521 = sand.u32 %s28, 1
          %s522 = scalar_lea.sflag [#allocation7], %s521
          %s523 = sand.u32 %s267, 1
          %s524 = smul.addr %s523, 256
          %s525 = scalar_lea.vmem [#allocation6], %s524
          %s527 = ssub.s32 4096, 4096
          %528 = vsyncadd %s522, %s527
          %s529 = smul.addr %s28, 64
          %s530 = smul.addr %s529, 64
          %s531 = scalar_lea.hbm %s9, %s530
          %s532 = sshll.u32 %s525, 4
          %s533 = int_to_ptr.vmem [resolvable:$true] %s532
          %538 = dma.hbm_to_vmem [thread:$0]  %s531, 4096, %s533, %s522, 256, 256, 16
        $region64: #{gpt2_forward.1} parent=27 // pred_fallthru
          _
        // Predicated region
        $region65: #{gpt2_forward.1} parent=27 // pred_check
          %p539 = pneg %p303
        $region66: #{gpt2_forward.1} parent=27 // pred_check_branch
          %541 = sbr.rel (%p539) target = $region68
        $region67: #{gpt2_forward.1} parent=27 // pred_region
          %p542 = scmp.lt.s32.totalorder %s28, 1
          %s543 = scalar_select %p542, %s28, 1
          %s544 = smul.addr %s543, 4
          %s545 = scalar_lea.vmem %s10, %s544
        $region68: #{gpt2_forward.1} parent=27 // pred_fallthru
          _
        // Predicated region
        $region69: #{gpt2_forward.1} parent=27 // pred_check
          %p546 = pneg %p329
        $region70: #{gpt2_forward.1} parent=27 // pred_check_branch
          %548 = sbr.rel (%p546) target = $region72
        $region71: #{gpt2_forward.1} parent=27 // pred_region
          %s549 = sand.u32 %s28, 1
          %s550 = scalar_lea.sflag [#allocation7], %s549
          %s551 = sand.u32 %s319, 1
          %s552 = smul.addr %s551, 256
          %s553 = scalar_lea.vmem [#allocation8], %s552
          %s555 = ssub.s32 4096, 4096
          %556 = vsyncadd %s550, %s555
          %s557 = smul.addr %s28, 64
          %s558 = smul.addr %s557, 64
          %s559 = scalar_lea.hbm %s11, %s558
          %s560 = sshll.u32 %s553, 4
          %s561 = int_to_ptr.vmem [resolvable:$true] %s560
          %566 = dma.hbm_to_vmem [thread:$0]  %s559, 4096, %s561, %s550, 64, 64, 4
        $region72: #{gpt2_forward.1} parent=27 // pred_fallthru
          _
        // Predicated region
        $region73: #{gpt2_forward.1} parent=27 // pred_check
          %p567 = pneg %p355
        $region74: #{gpt2_forward.1} parent=27 // pred_check_branch
          %569 = sbr.rel (%p567) target = $region76
        $region75: #{gpt2_forward.1} parent=27 // pred_region
          %p570 = scmp.lt.s32.totalorder %s28, 1
          %s571 = scalar_select %p570, %s28, 1
          %s572 = scalar_lea.vmem %s12, %s571
        $region76: #{gpt2_forward.1} parent=27 // pred_fallthru
          _
      $region28: #{gpt2_forward.1} parent=5 // pred_fallthru
        _
      %p573 = scmp.le.s32.totalorder 1, %s28
      %p574 = scmp.lt.s32.totalorder %s28, 3
      %p575 = pnand %p573, %p574
      %p576 = pneg %p575
      // Predicated region
      $region77: #{gpt2_forward.1} parent=5 // pred_check
        _
      $region78: #{gpt2_forward.1} parent=5 // pred_check_branch
        %578 = sbr.rel (%p575) target = $region80
      $region79: #{gpt2_forward.1} parent=5 // pred_region
        %s579 = ssub.s32 %s28, 1
        %s580 = sand.u32 %s114, 1
        %s581 = scalar_lea.sflag [#allocation4], %s580
        %s582 = sand.u32 %s114, 1
        %s583 = smul.addr %s582, 192
        %s584 = scalar_lea.vmem [#allocation3], %s583
        // Predicated region
        $region81: #{gpt2_forward.1} parent=79 // pred_check
          %p585 = pneg %p127
        $region82: #{gpt2_forward.1} parent=79 // pred_check_branch
          %587 = sbr.rel (%p585) target = $region84
        $region83: #{gpt2_forward.1} parent=79 // pred_region
          %588 = dma.done %s581, 3072
        $region84: #{gpt2_forward.1} parent=79 // pred_fallthru
          _
        %s589 = sand.u32 %s33, 1
        %s590 = scalar_lea.sflag [#allocation7], %s589
        %s591 = sand.u32 %s270, 1
        %s592 = smul.addr %s591, 256
        %s593 = scalar_lea.vmem [#allocation6], %s592
        // Predicated region
        $region85: #{gpt2_forward.1} parent=79 // pred_check
          %p594 = pneg %p283
        $region86: #{gpt2_forward.1} parent=79 // pred_check_branch
          %596 = sbr.rel (%p594) target = $region88
        $region87: #{gpt2_forward.1} parent=79 // pred_region
          %597 = dma.done %s590, 4096
        $region88: #{gpt2_forward.1} parent=79 // pred_fallthru
          _
        %s598 = sand.u32 %s33, 1
        %s599 = scalar_lea.sflag [#allocation7], %s598
        %s600 = sand.u32 %s322, 1
        %s601 = smul.addr %s600, 256
        %s602 = scalar_lea.vmem [#allocation8], %s601
        // Predicated region
        $region89: #{gpt2_forward.1} parent=79 // pred_check
          %p603 = pneg %p335
        $region90: #{gpt2_forward.1} parent=79 // pred_check_branch
          %605 = sbr.rel (%p603) target = $region92
        $region91: #{gpt2_forward.1} parent=79 // pred_region
          %606 = dma.done %s599, 4096
        $region92: #{gpt2_forward.1} parent=79 // pred_fallthru
          _
        %p607 = pneg %p49
        %p608 = pneg %p46
        %p609 = scmp.lt.s32.totalorder %s33, 1
        %s610 = scalar_select %p609, %s33, 1
        %s611 = scalar_lea.vmem %s1, %s610
        %p612 = pneg %p75
        %p613 = pneg %p72
        %p614 = scmp.lt.s32.totalorder %s33, 1
        %s615 = scalar_select %p614, %s33, 1
        %s616 = scalar_lea.vmem %s2, %s615
        %p617 = pneg %p101
        %p618 = pneg %p98
        %s619 = sand.u32 %s114, 1
        %s620 = scalar_lea.sflag [#allocation4], %s619
        %s621 = sand.u32 %s114, 1
        %s622 = smul.addr %s621, 192
        %s623 = scalar_lea.vmem [#allocation3], %s622
        %p624 = pneg %p127
        %p625 = pneg %p124
        %p626 = scmp.lt.s32.totalorder %s33, 1
        %s627 = scalar_select %p626, %s33, 1
        %s628 = smul.addr %s627, 3
        %s629 = scalar_lea.vmem %s4, %s628
        %p630 = pneg %p153
        %p631 = pneg %p150
        %p632 = scmp.lt.s32.totalorder %s33, 1
        %s633 = scalar_select %p632, %s33, 1
        %s634 = smul.addr %s633, 16
        %s635 = smul.addr %s634, 4
        %s636 = scalar_lea.vmem %s5, %s635
        %p637 = pneg %p179
        %p638 = pneg %p176
        %p639 = scmp.lt.s32.totalorder %s33, 1
        %s640 = scalar_select %p639, %s33, 1
        %s641 = scalar_lea.vmem %s6, %s640
        %p642 = pneg %p205
        %p643 = pneg %p202
        %p644 = scmp.lt.s32.totalorder %s33, 1
        %s645 = scalar_select %p644, %s33, 1
        %s646 = scalar_lea.vmem %s7, %s645
        %p647 = pneg %p231
        %p648 = pneg %p228
        %p649 = scmp.lt.s32.totalorder %s33, 1
        %s650 = scalar_select %p649, %s33, 1
        %s651 = scalar_lea.vmem %s8, %s650
        %p652 = pneg %p257
        %p653 = pneg %p254
        %s654 = sand.u32 %s33, 1
        %s655 = scalar_lea.sflag [#allocation7], %s654
        %s656 = sand.u32 %s270, 1
        %s657 = smul.addr %s656, 256
        %s658 = scalar_lea.vmem [#allocation6], %s657
        %p659 = pneg %p283
        %p660 = pneg %p280
        %p661 = scmp.lt.s32.totalorder %s33, 1
        %s662 = scalar_select %p661, %s33, 1
        %s663 = smul.addr %s662, 4
        %s664 = scalar_lea.vmem %s10, %s663
        %p665 = pneg %p309
        %p666 = pneg %p306
        %s667 = sand.u32 %s33, 1
        %s668 = scalar_lea.sflag [#allocation7], %s667
        %s669 = sand.u32 %s322, 1
        %s670 = smul.addr %s669, 256
        %s671 = scalar_lea.vmem [#allocation8], %s670
        %p672 = pneg %p335
        %p673 = pneg %p332
        %p674 = scmp.lt.s32.totalorder %s33, 1
        %s675 = scalar_select %p674, %s33, 1
        %s676 = scalar_lea.vmem %s12, %s675
        %p677 = pneg %p361
        %p678 = pneg %p358
        %p679 = pneg %p382
        %p680 = pneg %p379
        %p681 = pneg %p403
        %p682 = pneg %p400
        %p683 = pneg %p424
        %p684 = pneg %p421
        %p685 = scmp.lt.s32.totalorder %s33, 1
        %s686 = scalar_select %p685, %s33, 1
        %s687 = scalar_lea.vmem %s1, %s686
        %p688 = scmp.lt.s32.totalorder %s33, 1
        %s689 = scalar_select %p688, %s33, 1
        %s690 = scalar_lea.vmem %s2, %s689
        %p691 = scmp.lt.s32.totalorder %s33, 1
        %s692 = scalar_select %p691, %s33, 1
        %s693 = smul.addr %s692, 3
        %s694 = scalar_lea.vmem %s4, %s693
        %p695 = scmp.lt.s32.totalorder %s33, 1
        %s696 = scalar_select %p695, %s33, 1
        %s697 = smul.addr %s696, 16
        %s698 = smul.addr %s697, 4
        %s699 = scalar_lea.vmem %s5, %s698
        %p700 = scmp.lt.s32.totalorder %s33, 1
        %s701 = scalar_select %p700, %s33, 1
        %s702 = scalar_lea.vmem %s6, %s701
        %p703 = scmp.lt.s32.totalorder %s33, 1
        %s704 = scalar_select %p703, %s33, 1
        %s705 = scalar_lea.vmem %s7, %s704
        %p706 = scmp.lt.s32.totalorder %s33, 1
        %s707 = scalar_select %p706, %s33, 1
        %s708 = scalar_lea.vmem %s8, %s707
        %p709 = scmp.lt.s32.totalorder %s33, 1
        %s710 = scalar_select %p709, %s33, 1
        %s711 = smul.addr %s710, 4
        %s712 = scalar_lea.vmem %s10, %s711
        %p713 = scmp.lt.s32.totalorder %s33, 1
        %s714 = scalar_select %p713, %s33, 1
        %s715 = scalar_lea.vmem %s12, %s714
        %p717 = scmp.eq.s32.totalorder %s33, 0
        // Predicated region
        $region93: #{gpt2_forward.1} parent=79 // pred_check
          %p718 = pneg %p717
        $region94: #{gpt2_forward.1} parent=79 // pred_check_branch
          %720 = sbr.rel (%p718) target = $region96
        $region95: #{gpt2_forward.1} parent=79 // pred_region
          %v721 = vld [vmem:[%s0] sm:$0xff]
          %722 = vst [vmem:[#allocation2] sm:$0xff] %v721
        $region96: #{gpt2_forward.1} parent=79 // pred_fallthru
          _
        %v723 = vld [vmem:[#allocation2] sm:$0xff]
        %v724 = vld [vmem:[%s687] sm:$0x1]
        %v725 = vld [vmem:[%s690] sm:$0x1]
        %726 = vadd.xlane.f32.xlu0 %v723
        %v727 = vpop.xlane.xlu0 %726
        %v728 = vrcp.pop 128.0
        %v729 = vmul.f32 %v727, %v728
        %v730 = vsub.f32 %v723, %v729
        %v731 = vmul.f32 %v730, %v730
        %732 = vadd.xlane.f32.xlu0 %v731
        %v733 = vpop.xlane.xlu0 %732
        %v734 = vmul.f32 %v733, %v728
        %v735 = vadd.f32 %v734, 1e-05
        %v736 = vrsqrt.pop %v735
        %v737 = vmul.f32 %v730, %v736
        %v739 = vlaneseq
        %v740 = vshrl.u32 %v739, 7
        %v741 = vsub.s32 0, %v740
        %v742 = vrot.slane %v724, %v741
        %v744 = vmul.f32 %v737, %v742
        %v746 = vlaneseq
        %v747 = vshrl.u32 %v746, 7
        %v748 = vsub.s32 0, %v747
        %v749 = vrot.slane %v725, %v748
        %v751 = vadd.f32 %v744, %v749
        %v752 = vpack.c.bf16 %v751, %v751
        %v753 = vld [vmem:[%s584] sm:$0xff]
        %v754 = vld [vmem:[%s584 + $0x8] sm:$0xf]
        %v755 = vld [vmem:[%s584 + $0xc] sm:$0xff]
        %v756 = vld [vmem:[%s584 + $0x14] sm:$0xf]
        %v757 = vld [vmem:[%s584 + $0x18] sm:$0xff]
        %v758 = vld [vmem:[%s584 + $0x20] sm:$0xf]
        %v759 = vld [vmem:[%s584 + $0x24] sm:$0xff]
        %v760 = vld [vmem:[%s584 + $0x2c] sm:$0xf]
        %v761 = vld [vmem:[%s584 + $0x30] sm:$0xff]
        %v762 = vld [vmem:[%s584 + $0x38] sm:$0xf]
        %v763 = vld [vmem:[%s584 + $0x3c] sm:$0xff]
        %v764 = vld [vmem:[%s584 + $0x44] sm:$0xf]
        %v765 = vld [vmem:[%s584 + $0x48] sm:$0xff]
        %v766 = vld [vmem:[%s584 + $0x50] sm:$0xf]
        %v767 = vld [vmem:[%s584 + $0x54] sm:$0xff]
        %v768 = vld [vmem:[%s584 + $0x5c] sm:$0xf]
        %v769 = vld [vmem:[%s584 + $0x60] sm:$0xff]
        %v770 = vld [vmem:[%s584 + $0x68] sm:$0xf]
        %v771 = vld [vmem:[%s584 + $0x6c] sm:$0xff]
        %v772 = vld [vmem:[%s584 + $0x74] sm:$0xf]
        %v773 = vld [vmem:[%s584 + $0x78] sm:$0xff]
        %v774 = vld [vmem:[%s584 + $0x80] sm:$0xf]
        %v775 = vld [vmem:[%s584 + $0x84] sm:$0xff]
        %v776 = vld [vmem:[%s584 + $0x8c] sm:$0xf]
        %v777 = vld [vmem:[%s584 + $0x90] sm:$0xff]
        %v778 = vld [vmem:[%s584 + $0x98] sm:$0xf]
        %v779 = vld [vmem:[%s584 + $0x9c] sm:$0xff]
        %v780 = vld [vmem:[%s584 + $0xa4] sm:$0xf]
        %v781 = vld [vmem:[%s584 + $0xa8] sm:$0xff]
        %v782 = vld [vmem:[%s584 + $0xb0] sm:$0xf]
        %v783 = vld [vmem:[%s584 + $0xb4] sm:$0xff]
        %v784 = vld [vmem:[%s584 + $0xbc] sm:$0xf]
        %v785 = vld [vmem:[%s694] sm:$0x7]
        %v787 = vlaneseq
        %v788 = vshrl.u32 %v787, 7
        %v789 = vsub.s32 0, %v788
        %v790 = vrot.slane %v785, %v789
        %v791 = vlaneseq
        %v792 = vshrl.u32 %v791, 7
        %v793 = vsub.s32 1, %v792
        %v794 = vrot.slane %v785, %v793
        %v795 = vlaneseq
        %v796 = vshrl.u32 %v795, 7
        %v797 = vsub.s32 2, %v796
        %v798 = vrot.slane %v785, %v797
        %v834 = vunpack.c.l.b16 %v753
        %v835 = vunpack.c.h.b16 %v753
        %v836 = vunpack.c.l.b16 %v754
        %v837 = vunpack.c.l.b16 %v755
        %v838 = vunpack.c.h.b16 %v755
        %v839 = vunpack.c.l.b16 %v756
        %v840 = vunpack.c.l.b16 %v757
        %v841 = vunpack.c.h.b16 %v757
        %v842 = vunpack.c.l.b16 %v758
        %v843 = vunpack.c.l.b16 %v759
        %v844 = vunpack.c.h.b16 %v759
        %v845 = vunpack.c.l.b16 %v760
        %v846 = vunpack.c.l.b16 %v761
        %v847 = vunpack.c.h.b16 %v761
        %v848 = vunpack.c.l.b16 %v762
        %v849 = vunpack.c.l.b16 %v763
        %v850 = vunpack.c.h.b16 %v763
        %v851 = vunpack.c.l.b16 %v764
        %v852 = vunpack.c.l.b16 %v765
        %v853 = vunpack.c.h.b16 %v765
        %v854 = vunpack.c.l.b16 %v766
        %v855 = vunpack.c.l.b16 %v767
        %v856 = vunpack.c.h.b16 %v767
        %v857 = vunpack.c.l.b16 %v768
        %v858 = vunpack.c.l.b16 %v769
        %v859 = vunpack.c.h.b16 %v769
        %v860 = vunpack.c.l.b16 %v770
        %v861 = vunpack.c.l.b16 %v771
        %v862 = vunpack.c.h.b16 %v771
        %v863 = vunpack.c.l.b16 %v772
        %v864 = vunpack.c.l.b16 %v773
        %v865 = vunpack.c.h.b16 %v773
        %v866 = vunpack.c.l.b16 %v774
        %v867 = vunpack.c.l.b16 %v775
        %v868 = vunpack.c.h.b16 %v775
        %v869 = vunpack.c.l.b16 %v776
        %v870 = vunpack.c.l.b16 %v777
        %v871 = vunpack.c.h.b16 %v777
        %v872 = vunpack.c.l.b16 %v778
        %v873 = vunpack.c.l.b16 %v779
        %v874 = vunpack.c.h.b16 %v779
        %v875 = vunpack.c.l.b16 %v780
        %v876 = vunpack.c.l.b16 %v781
        %v877 = vunpack.c.h.b16 %v781
        %v878 = vunpack.c.l.b16 %v782
        %v879 = vunpack.c.l.b16 %v783
        %v880 = vunpack.c.h.b16 %v783
        %v881 = vunpack.c.l.b16 %v784
        %v882 = vpack.c.b16 %v837, %v834
        %v883 = vpack.c.b16 %v838, %v835
        %v884 = vpack.c.b16 %v839, %v836
        %v885 = vpack.c.b16 %v843, %v840
        %v886 = vpack.c.b16 %v844, %v841
        %v887 = vpack.c.b16 %v845, %v842
        %v888 = vpack.c.b16 %v849, %v846
        %v889 = vpack.c.b16 %v850, %v847
        %v890 = vpack.c.b16 %v851, %v848
        %v891 = vpack.c.b16 %v855, %v852
        %v892 = vpack.c.b16 %v856, %v853
        %v893 = vpack.c.b16 %v857, %v854
        %v894 = vpack.c.b16 %v861, %v858
        %v895 = vpack.c.b16 %v862, %v859
        %v896 = vpack.c.b16 %v863, %v860
        %v897 = vpack.c.b16 %v867, %v864
        %v898 = vpack.c.b16 %v868, %v865
        %v899 = vpack.c.b16 %v869, %v866
        %v900 = vpack.c.b16 %v873, %v870
        %v901 = vpack.c.b16 %v874, %v871
        %v902 = vpack.c.b16 %v875, %v872
        %v903 = vpack.c.b16 %v879, %v876
        %v904 = vpack.c.b16 %v880, %v877
        %v905 = vpack.c.b16 %v881, %v878
        %930 = vmatprep.subr.bf16.mxu0 %v883
        %931 = vmatpush1.bf16.msra.mxu0 %v882
        %932 = vmatprep.subr.bf16.mxu0 %v886
        %933 = vmatpush1.bf16.msra.mxu0 %v885
        %934 = vmatprep.subr.bf16.mxu0 %v889
        %935 = vmatpush1.bf16.msra.mxu0 %v888
        %936 = vmatprep.subr.bf16.mxu0 %v892
        %937 = vmatpush1.bf16.msra.mxu0 %v891
        %938 = vmatprep.subr.bf16.mxu0 %v895
        %939 = vmatpush1.bf16.msra.mxu0 %v894
        %940 = vmatprep.subr.bf16.mxu0 %v898
        %941 = vmatpush1.bf16.msra.mxu0 %v897
        %942 = vmatprep.subr.bf16.mxu0 %v901
        %943 = vmatpush1.bf16.msra.mxu0 %v900
        %944 = vmatprep.subr.bf16.mxu0 %v904
        %945 = vmatpush1.bf16.msra.mxu0 %v903
        %946 = vmatprep.subr.bf16.mxu0 0
        %947 = vmatpush1.bf16.msra.mxu0 0
        %948 = vmatprep.subr.bf16.mxu0 0
        %949 = vmatpush1.bf16.msra.mxu0 0
        %950 = vmatprep.subr.bf16.mxu0 0
        %951 = vmatpush1.bf16.msra.mxu0 0
        %952 = vmatprep.subr.bf16.mxu0 0
        %953 = vmatpush1.bf16.msra.mxu0 0
        %954 = vmatprep.subr.bf16.mxu0 0
        %955 = vmatpush1.bf16.msra.mxu0 0
        %956 = vmatprep.subr.bf16.mxu0 0
        %957 = vmatpush1.bf16.msra.mxu0 0
        %958 = vmatprep.subr.bf16.mxu0 0
        %959 = vmatpush1.bf16.msra.mxu0 0
        %960 = vmatprep.subr.bf16.mxu0 0
        %961 = vmatpush1.bf16.msra.mxu0 0
        %962 = vmatprep.mubr.bf16.mxu0 0
        %963 = vmatmul.mubr.bf16.gmra.mrb[0].mxu0 %v752
        %v964 = vpop.f32.mrb[0].mxu0
        %v965 = vadd.f32 %v790, %v964
        %v966 = vpop.f32.mrb[0].mxu0
        %v967 = vadd.f32 %v794, %v966
        %v968 = vpop.f32.mrb[0].mxu0
        %v969 = vpop.f32.mrb[0].mxu0
        %970 = vdwg.mxu0
        %971 = vmatprep.subr.bf16.mxu0 0
        %972 = vmatpush1.bf16.msra.mxu0 %v884
        %973 = vmatprep.subr.bf16.mxu0 0
        %974 = vmatpush1.bf16.msra.mxu0 %v887
        %975 = vmatprep.subr.bf16.mxu0 0
        %976 = vmatpush1.bf16.msra.mxu0 %v890
        %977 = vmatprep.subr.bf16.mxu0 0
        %978 = vmatpush1.bf16.msra.mxu0 %v893
        %979 = vmatprep.subr.bf16.mxu0 0
        %980 = vmatpush1.bf16.msra.mxu0 %v896
        %981 = vmatprep.subr.bf16.mxu0 0
        %982 = vmatpush1.bf16.msra.mxu0 %v899
        %983 = vmatprep.subr.bf16.mxu0 0
        %984 = vmatpush1.bf16.msra.mxu0 %v902
        %985 = vmatprep.subr.bf16.mxu0 0
        %986 = vmatpush1.bf16.msra.mxu0 %v905
        %987 = vmatprep.subr.bf16.mxu0 0
        %988 = vmatpush1.bf16.msra.mxu0 0
        %989 = vmatprep.subr.bf16.mxu0 0
        %990 = vmatpush1.bf16.msra.mxu0 0
        %991 = vmatprep.subr.bf16.mxu0 0
        %992 = vmatpush1.bf16.msra.mxu0 0
        %993 = vmatprep.subr.bf16.mxu0 0
        %994 = vmatpush1.bf16.msra.mxu0 0
        %995 = vmatprep.subr.bf16.mxu0 0
        %996 = vmatpush1.bf16.msra.mxu0 0
        %997 = vmatprep.subr.bf16.mxu0 0
        %998 = vmatpush1.bf16.msra.mxu0 0
        %999 = vmatprep.subr.bf16.mxu0 0
        %1000 = vmatpush1.bf16.msra.mxu0 0
        %1001 = vmatprep.subr.bf16.mxu0 0
        %1002 = vmatpush1.bf16.msra.mxu0 0
        %1003 = vmatprep.mubr.bf16.mxu0 0
        %1004 = vmatmul.mubr.bf16.gmra.mrb[0].mxu0 %v752
        %v1005 = vpop.f32.mrb[0].mxu0
        %v1006 = vadd.f32 %v798, %v1005
        %v1007 = vpop.f32.mrb[0].mxu0
        %v1008 = vpop.f32.mrb[0].mxu0
        %v1009 = vpop.f32.mrb[0].mxu0
        %1010 = vdwg.mxu0
        %v1011 = vlaneseq
        %v1012 = vshrl.u32 %v1011, 7
        %v1013 = vlaneseq
        %v1014 = vand.u32 %v1013, 127
        %vm1015 = vcmp.le.s32.totalorder %v1014, %v1012
        %v1016 = vsel %vm1015, 0.0, -1e+30
        %v1017 = vpack.c.bf16 %v965, %v965
        %v1018 = vpack.c.bf16 %v967, %v967
        %v1019 = vpack.c.bf16 %v1006, %v1006
        %vm1020 = vcmask 261120
        %v1022 = vsel %vm1020, %v1017, 0
        %v1025 = vsel %vm1020, %v1018, 0
        %1027 = vmatprep.subr.bf16.mxu0 0
        %1028 = vmatpush1.bf16.xpose.msra.mxu0 %v1025
        %1029 = vmatprep.subr.bf16.mxu0 0
        %1030 = vmatpush1.bf16.xpose.msra.mxu0 0
        %1031 = vmatprep.subr.bf16.mxu0 0
        %1032 = vmatpush1.bf16.xpose.msra.mxu0 0
        %1033 = vmatprep.subr.bf16.mxu0 0
        %1034 = vmatpush1.bf16.xpose.msra.mxu0 0
        %1035 = vmatprep.subr.bf16.mxu0 0
        %1036 = vmatpush1.bf16.xpose.msra.mxu0 0
        %1037 = vmatprep.subr.bf16.mxu0 0
        %1038 = vmatpush1.bf16.xpose.msra.mxu0 0
        %1039 = vmatprep.subr.bf16.mxu0 0
        %1040 = vmatpush1.bf16.xpose.msra.mxu0 0
        %1041 = vmatprep.subr.bf16.mxu0 0
        %1042 = vmatpush1.bf16.xpose.msra.mxu0 0
        %1043 = vmatprep.subr.bf16.mxu0 0
        %1044 = vmatpush1.bf16.xpose.msra.mxu0 0
        %1045 = vmatprep.subr.bf16.mxu0 0
        %1046 = vmatpush1.bf16.xpose.msra.mxu0 0
        %1047 = vmatprep.subr.bf16.mxu0 0
        %1048 = vmatpush1.bf16.xpose.msra.mxu0 0
        %1049 = vmatprep.subr.bf16.mxu0 0
        %1050 = vmatpush1.bf16.xpose.msra.mxu0 0
        %1051 = vmatprep.subr.bf16.mxu0 0
        %1052 = vmatpush1.bf16.xpose.msra.mxu0 0
        %1053 = vmatprep.subr.bf16.mxu0 0
        %1054 = vmatpush1.bf16.xpose.msra.mxu0 0
        %1055 = vmatprep.subr.bf16.mxu0 0
        %1056 = vmatpush1.bf16.xpose.msra.mxu0 0
        %1057 = vmatprep.subr.bf16.mxu0 0
        %1058 = vmatpush1.bf16.xpose.msra.mxu0 0
        %1059 = vmatprep.mubr.bf16.mxu0 0
        %1060 = vmatmul.mubr.bf16.gmra.mrb[0].mxu0 %v1022
        %v1061 = vpop.f32.mrb[0].mxu0
        %v1062 = vadd.f32 0.0, %v1061
        %v1063 = vpop.f32.mrb[0].mxu0
        %v1064 = vpop.f32.mrb[0].mxu0
        %v1065 = vpop.f32.mrb[0].mxu0
        %1066 = vdwg.mxu0
        %v1067 = vmul.f32 %v1062, 0.17677669
        %v1068 = vadd.f32 %v1067, %v1016
        %vm1069 = vcmask 64512
        %v1070 = vsel %vm1069, %v1068, -inf
        %1071 = vmax.xlane.f32.xlu0 %v1070
        %v1072 = vpop.xlane.xlu0 %1071
        %v1073 = vsub.f32 %v1068, %v1072
        %v1074 = vmul.f32 %v1073, 1.442695
        %v1075 = vpow.pop %v1074
        %v1076 = vsel %vm1069, %v1075, 0.0
        %1077 = vadd.xlane.f32.xlu0 %v1076
        %v1078 = vpop.xlane.xlu0 %1077
        %v1079 = vrcp.pop %v1078
        %v1080 = vmul.f32 %v1075, %v1079
        %v1081 = vpack.c.bf16 %v1080, %v1080
        %v1083 = vsel %vm1069, %v1081, 0
        %vm1085 = vcmask 1043456
        %v1087 = vsel %vm1085, %v1019, 0
        %1089 = vmatprep.subr.bf16.mxu0 0
        %1090 = vmatpush1.bf16.msra.mxu0 %v1087
        %1091 = vmatprep.subr.bf16.mxu0 0
        %1092 = vmatpush1.bf16.msra.mxu0 0
        %1093 = vmatprep.subr.bf16.mxu0 0
        %1094 = vmatpush1.bf16.msra.mxu0 0
        %1095 = vmatprep.subr.bf16.mxu0 0
        %1096 = vmatpush1.bf16.msra.mxu0 0
        %1097 = vmatprep.subr.bf16.mxu0 0
        %1098 = vmatpush1.bf16.msra.mxu0 0
        %1099 = vmatprep.subr.bf16.mxu0 0
        %1100 = vmatpush1.bf16.msra.mxu0 0
        %1101 = vmatprep.subr.bf16.mxu0 0
        %1102 = vmatpush1.bf16.msra.mxu0 0
        %1103 = vmatprep.subr.bf16.mxu0 0
        %1104 = vmatpush1.bf16.msra.mxu0 0
        %1105 = vmatprep.subr.bf16.mxu0 0
        %1106 = vmatpush1.bf16.msra.mxu0 0
        %1107 = vmatprep.subr.bf16.mxu0 0
        %1108 = vmatpush1.bf16.msra.mxu0 0
        %1109 = vmatprep.subr.bf16.mxu0 0
        %1110 = vmatpush1.bf16.msra.mxu0 0
        %1111 = vmatprep.subr.bf16.mxu0 0
        %1112 = vmatpush1.bf16.msra.mxu0 0
        %1113 = vmatprep.subr.bf16.mxu0 0
        %1114 = vmatpush1.bf16.msra.mxu0 0
        %1115 = vmatprep.subr.bf16.mxu0 0
        %1116 = vmatpush1.bf16.msra.mxu0 0
        %1117 = vmatprep.subr.bf16.mxu0 0
        %1118 = vmatpush1.bf16.msra.mxu0 0
        %1119 = vmatprep.subr.bf16.mxu0 0
        %1120 = vmatpush1.bf16.msra.mxu0 0
        %1121 = vmatprep.mubr.bf16.mxu0 0
        %1122 = vmatmul.mubr.bf16.gmra.mrb[0].mxu0 %v1083
        %v1123 = vpop.f32.mrb[0].mxu0
        %v1124 = vadd.f32 0.0, %v1123
        %v1125 = vpop.f32.mrb[0].mxu0
        %v1126 = vpop.f32.mrb[0].mxu0
        %v1127 = vpop.f32.mrb[0].mxu0
        %1128 = vdwg.mxu0
        %1130 = vrot.lane.b32.xlu0 %v1017, 96
        %v1131 = vpop.permute.xlu0 %1130
        %1133 = vrot.lane.b32.xlu0 %v1018, 96
        %v1134 = vpop.permute.xlu0 %1133
        %v1136 = vsel %vm1020, %v1131, 0
        %v1139 = vsel %vm1020, %v1134, 0
        %1141 = vmatprep.subr.bf16.mxu0 0
        %1142 = vmatpush1.bf16.xpose.msra.mxu0 %v1139
        %1143 = vmatprep.subr.bf16.mxu0 0
        %1144 = vmatpush1.bf16.xpose.msra.mxu0 0
        %1145 = vmatprep.subr.bf16.mxu0 0
        %1146 = vmatpush1.bf16.xpose.msra.mxu0 0
        %1147 = vmatprep.subr.bf16.mxu0 0
        %1148 = vmatpush1.bf16.xpose.msra.mxu0 0
        %1149 = vmatprep.subr.bf16.mxu0 0
        %1150 = vmatpush1.bf16.xpose.msra.mxu0 0
        %1151 = vmatprep.subr.bf16.mxu0 0
        %1152 = vmatpush1.bf16.xpose.msra.mxu0 0
        %1153 = vmatprep.subr.bf16.mxu0 0
        %1154 = vmatpush1.bf16.xpose.msra.mxu0 0
        %1155 = vmatprep.subr.bf16.mxu0 0
        %1156 = vmatpush1.bf16.xpose.msra.mxu0 0
        %1157 = vmatprep.subr.bf16.mxu0 0
        %1158 = vmatpush1.bf16.xpose.msra.mxu0 0
        %1159 = vmatprep.subr.bf16.mxu0 0
        %1160 = vmatpush1.bf16.xpose.msra.mxu0 0
        %1161 = vmatprep.subr.bf16.mxu0 0
        %1162 = vmatpush1.bf16.xpose.msra.mxu0 0
        %1163 = vmatprep.subr.bf16.mxu0 0
        %1164 = vmatpush1.bf16.xpose.msra.mxu0 0
        %1165 = vmatprep.subr.bf16.mxu0 0
        %1166 = vmatpush1.bf16.xpose.msra.mxu0 0
        %1167 = vmatprep.subr.bf16.mxu0 0
        %1168 = vmatpush1.bf16.xpose.msra.mxu0 0
        %1169 = vmatprep.subr.bf16.mxu0 0
        %1170 = vmatpush1.bf16.xpose.msra.mxu0 0
        %1171 = vmatprep.subr.bf16.mxu0 0
        %1172 = vmatpush1.bf16.xpose.msra.mxu0 0
        %1173 = vmatprep.mubr.bf16.mxu0 0
        %1174 = vmatmul.mubr.bf16.gmra.mrb[0].mxu0 %v1136
        %v1175 = vpop.f32.mrb[0].mxu0
        %v1176 = vadd.f32 0.0, %v1175
        %v1177 = vpop.f32.mrb[0].mxu0
        %v1178 = vpop.f32.mrb[0].mxu0
        %v1179 = vpop.f32.mrb[0].mxu0
        %1180 = vdwg.mxu0
        %v1181 = vmul.f32 %v1176, 0.17677669
        %v1182 = vadd.f32 %v1181, %v1016
        %v1183 = vsel %vm1069, %v1182, -inf
        %1184 = vmax.xlane.f32.xlu0 %v1183
        %v1185 = vpop.xlane.xlu0 %1184
        %v1186 = vsub.f32 %v1182, %v1185
        %v1187 = vmul.f32 %v1186, 1.442695
        %v1188 = vpow.pop %v1187
        %v1189 = vsel %vm1069, %v1188, 0.0
        %1190 = vadd.xlane.f32.xlu0 %v1189
        %v1191 = vpop.xlane.xlu0 %1190
        %v1192 = vrcp.pop %v1191
        %v1193 = vmul.f32 %v1188, %v1192
        %v1194 = vpack.c.bf16 %v1193, %v1193
        %1196 = vrot.lane.b32.xlu0 %v1019, 96
        %v1197 = vpop.permute.xlu0 %1196
        %v1199 = vsel %vm1069, %v1194, 0
        %v1202 = vsel %vm1085, %v1197, 0
        %1204 = vmatprep.subr.bf16.mxu0 0
        %1205 = vmatpush1.bf16.msra.mxu0 %v1202
        %1206 = vmatprep.subr.bf16.mxu0 0
        %1207 = vmatpush1.bf16.msra.mxu0 0
        %1208 = vmatprep.subr.bf16.mxu0 0
        %1209 = vmatpush1.bf16.msra.mxu0 0
        %1210 = vmatprep.subr.bf16.mxu0 0
        %1211 = vmatpush1.bf16.msra.mxu0 0
        %1212 = vmatprep.subr.bf16.mxu0 0
        %1213 = vmatpush1.bf16.msra.mxu0 0
        %1214 = vmatprep.subr.bf16.mxu0 0
        %1215 = vmatpush1.bf16.msra.mxu0 0
        %1216 = vmatprep.subr.bf16.mxu0 0
        %1217 = vmatpush1.bf16.msra.mxu0 0
        %1218 = vmatprep.subr.bf16.mxu0 0
        %1219 = vmatpush1.bf16.msra.mxu0 0
        %1220 = vmatprep.subr.bf16.mxu0 0
        %1221 = vmatpush1.bf16.msra.mxu0 0
        %1222 = vmatprep.subr.bf16.mxu0 0
        %1223 = vmatpush1.bf16.msra.mxu0 0
        %1224 = vmatprep.subr.bf16.mxu0 0
        %1225 = vmatpush1.bf16.msra.mxu0 0
        %1226 = vmatprep.subr.bf16.mxu0 0
        %1227 = vmatpush1.bf16.msra.mxu0 0
        %1228 = vmatprep.subr.bf16.mxu0 0
        %1229 = vmatpush1.bf16.msra.mxu0 0
        %1230 = vmatprep.subr.bf16.mxu0 0
        %1231 = vmatpush1.bf16.msra.mxu0 0
        %1232 = vmatprep.subr.bf16.mxu0 0
        %1233 = vmatpush1.bf16.msra.mxu0 0
        %1234 = vmatprep.subr.bf16.mxu0 0
        %1235 = vmatpush1.bf16.msra.mxu0 0
        %1236 = vmatprep.mubr.bf16.mxu0 0
        %1237 = vmatmul.mubr.bf16.gmra.mrb[0].mxu0 %v1199
        %v1238 = vpop.f32.mrb[0].mxu0
        %v1239 = vadd.f32 0.0, %v1238
        %v1240 = vpop.f32.mrb[0].mxu0
        %v1241 = vpop.f32.mrb[0].mxu0
        %v1242 = vpop.f32.mrb[0].mxu0
        %1243 = vdwg.mxu0
        %1244 = vrot.lane.b32.xlu0 %v1017, 64
        %v1245 = vpop.permute.xlu0 %1244
        %1246 = vrot.lane.b32.xlu0 %v1018, 64
        %v1247 = vpop.permute.xlu0 %1246
        %v1249 = vsel %vm1020, %v1245, 0
        %v1252 = vsel %vm1020, %v1247, 0
        %1254 = vmatprep.subr.bf16.mxu0 0
        %1255 = vmatpush1.bf16.xpose.msra.mxu0 %v1252
        %1256 = vmatprep.subr.bf16.mxu0 0
        %1257 = vmatpush1.bf16.xpose.msra.mxu0 0
        %1258 = vmatprep.subr.bf16.mxu0 0
        %1259 = vmatpush1.bf16.xpose.msra.mxu0 0
        %1260 = vmatprep.subr.bf16.mxu0 0
        %1261 = vmatpush1.bf16.xpose.msra.mxu0 0
        %1262 = vmatprep.subr.bf16.mxu0 0
        %1263 = vmatpush1.bf16.xpose.msra.mxu0 0
        %1264 = vmatprep.subr.bf16.mxu0 0
        %1265 = vmatpush1.bf16.xpose.msra.mxu0 0
        %1266 = vmatprep.subr.bf16.mxu0 0
        %1267 = vmatpush1.bf16.xpose.msra.mxu0 0
        %1268 = vmatprep.subr.bf16.mxu0 0
        %1269 = vmatpush1.bf16.xpose.msra.mxu0 0
        %1270 = vmatprep.subr.bf16.mxu0 0
        %1271 = vmatpush1.bf16.xpose.msra.mxu0 0
        %1272 = vmatprep.subr.bf16.mxu0 0
        %1273 = vmatpush1.bf16.xpose.msra.mxu0 0
        %1274 = vmatprep.subr.bf16.mxu0 0
        %1275 = vmatpush1.bf16.xpose.msra.mxu0 0
        %1276 = vmatprep.subr.bf16.mxu0 0
        %1277 = vmatpush1.bf16.xpose.msra.mxu0 0
        %1278 = vmatprep.subr.bf16.mxu0 0
        %1279 = vmatpush1.bf16.xpose.msra.mxu0 0
        %1280 = vmatprep.subr.bf16.mxu0 0
        %1281 = vmatpush1.bf16.xpose.msra.mxu0 0
        %1282 = vmatprep.subr.bf16.mxu0 0
        %1283 = vmatpush1.bf16.xpose.msra.mxu0 0
        %1284 = vmatprep.subr.bf16.mxu0 0
        %1285 = vmatpush1.bf16.xpose.msra.mxu0 0
        %1286 = vmatprep.mubr.bf16.mxu0 0
        %1287 = vmatmul.mubr.bf16.gmra.mrb[0].mxu0 %v1249
        %v1288 = vpop.f32.mrb[0].mxu0
        %v1289 = vadd.f32 0.0, %v1288
        %v1290 = vpop.f32.mrb[0].mxu0
        %v1291 = vpop.f32.mrb[0].mxu0
        %v1292 = vpop.f32.mrb[0].mxu0
        %1293 = vdwg.mxu0
        %v1294 = vmul.f32 %v1289, 0.17677669
        %v1295 = vadd.f32 %v1294, %v1016
        %v1296 = vsel %vm1069, %v1295, -inf
        %1297 = vmax.xlane.f32.xlu0 %v1296
        %v1298 = vpop.xlane.xlu0 %1297
        %v1299 = vsub.f32 %v1295, %v1298
        %v1300 = vmul.f32 %v1299, 1.442695
        %v1301 = vpow.pop %v1300
        %v1302 = vsel %vm1069, %v1301, 0.0
        %1303 = vadd.xlane.f32.xlu0 %v1302
        %v1304 = vpop.xlane.xlu0 %1303
        %v1305 = vrcp.pop %v1304
        %v1306 = vmul.f32 %v1301, %v1305
        %v1307 = vpack.c.bf16 %v1306, %v1306
        %1308 = vrot.lane.b32.xlu0 %v1019, 64
        %v1309 = vpop.permute.xlu0 %1308
        %v1311 = vsel %vm1069, %v1307, 0
        %v1314 = vsel %vm1085, %v1309, 0
        %1316 = vmatprep.subr.bf16.mxu0 0
        %1317 = vmatpush1.bf16.msra.mxu0 %v1314
        %1318 = vmatprep.subr.bf16.mxu0 0
        %1319 = vmatpush1.bf16.msra.mxu0 0
        %1320 = vmatprep.subr.bf16.mxu0 0
        %1321 = vmatpush1.bf16.msra.mxu0 0
        %1322 = vmatprep.subr.bf16.mxu0 0
        %1323 = vmatpush1.bf16.msra.mxu0 0
        %1324 = vmatprep.subr.bf16.mxu0 0
        %1325 = vmatpush1.bf16.msra.mxu0 0
        %1326 = vmatprep.subr.bf16.mxu0 0
        %1327 = vmatpush1.bf16.msra.mxu0 0
        %1328 = vmatprep.subr.bf16.mxu0 0
        %1329 = vmatpush1.bf16.msra.mxu0 0
        %1330 = vmatprep.subr.bf16.mxu0 0
        %1331 = vmatpush1.bf16.msra.mxu0 0
        %1332 = vmatprep.subr.bf16.mxu0 0
        %1333 = vmatpush1.bf16.msra.mxu0 0
        %1334 = vmatprep.subr.bf16.mxu0 0
        %1335 = vmatpush1.bf16.msra.mxu0 0
        %1336 = vmatprep.subr.bf16.mxu0 0
        %1337 = vmatpush1.bf16.msra.mxu0 0
        %1338 = vmatprep.subr.bf16.mxu0 0
        %1339 = vmatpush1.bf16.msra.mxu0 0
        %1340 = vmatprep.subr.bf16.mxu0 0
        %1341 = vmatpush1.bf16.msra.mxu0 0
        %1342 = vmatprep.subr.bf16.mxu0 0
        %1343 = vmatpush1.bf16.msra.mxu0 0
        %1344 = vmatprep.subr.bf16.mxu0 0
        %1345 = vmatpush1.bf16.msra.mxu0 0
        %1346 = vmatprep.subr.bf16.mxu0 0
        %1347 = vmatpush1.bf16.msra.mxu0 0
        %1348 = vmatprep.mubr.bf16.mxu0 0
        %1349 = vmatmul.mubr.bf16.gmra.mrb[0].mxu0 %v1311
        %v1350 = vpop.f32.mrb[0].mxu0
        %v1351 = vadd.f32 0.0, %v1350
        %v1352 = vpop.f32.mrb[0].mxu0
        %v1353 = vpop.f32.mrb[0].mxu0
        %v1354 = vpop.f32.mrb[0].mxu0
        %1355 = vdwg.mxu0
        %1356 = vrot.lane.b32.xlu0 %v1017, 32
        %v1357 = vpop.permute.xlu0 %1356
        %1358 = vrot.lane.b32.xlu0 %v1018, 32
        %v1359 = vpop.permute.xlu0 %1358
        %v1361 = vsel %vm1020, %v1357, 0
        %v1364 = vsel %vm1020, %v1359, 0
        %1366 = vmatprep.subr.bf16.mxu0 0
        %1367 = vmatpush1.bf16.xpose.msra.mxu0 %v1364
        %1368 = vmatprep.subr.bf16.mxu0 0
        %1369 = vmatpush1.bf16.xpose.msra.mxu0 0
        %1370 = vmatprep.subr.bf16.mxu0 0
        %1371 = vmatpush1.bf16.xpose.msra.mxu0 0
        %1372 = vmatprep.subr.bf16.mxu0 0
        %1373 = vmatpush1.bf16.xpose.msra.mxu0 0
        %1374 = vmatprep.subr.bf16.mxu0 0
        %1375 = vmatpush1.bf16.xpose.msra.mxu0 0
        %1376 = vmatprep.subr.bf16.mxu0 0
        %1377 = vmatpush1.bf16.xpose.msra.mxu0 0
        %1378 = vmatprep.subr.bf16.mxu0 0
        %1379 = vmatpush1.bf16.xpose.msra.mxu0 0
        %1380 = vmatprep.subr.bf16.mxu0 0
        %1381 = vmatpush1.bf16.xpose.msra.mxu0 0
        %1382 = vmatprep.subr.bf16.mxu0 0
        %1383 = vmatpush1.bf16.xpose.msra.mxu0 0
        %1384 = vmatprep.subr.bf16.mxu0 0
        %1385 = vmatpush1.bf16.xpose.msra.mxu0 0
        %1386 = vmatprep.subr.bf16.mxu0 0
        %1387 = vmatpush1.bf16.xpose.msra.mxu0 0
        %1388 = vmatprep.subr.bf16.mxu0 0
        %1389 = vmatpush1.bf16.xpose.msra.mxu0 0
        %1390 = vmatprep.subr.bf16.mxu0 0
        %1391 = vmatpush1.bf16.xpose.msra.mxu0 0
        %1392 = vmatprep.subr.bf16.mxu0 0
        %1393 = vmatpush1.bf16.xpose.msra.mxu0 0
        %1394 = vmatprep.subr.bf16.mxu0 0
        %1395 = vmatpush1.bf16.xpose.msra.mxu0 0
        %1396 = vmatprep.subr.bf16.mxu0 0
        %1397 = vmatpush1.bf16.xpose.msra.mxu0 0
        %1398 = vmatprep.mubr.bf16.mxu0 0
        %1399 = vmatmul.mubr.bf16.gmra.mrb[0].mxu0 %v1361
        %v1400 = vpop.f32.mrb[0].mxu0
        %v1401 = vadd.f32 0.0, %v1400
        %v1402 = vpop.f32.mrb[0].mxu0
        %v1403 = vpop.f32.mrb[0].mxu0
        %v1404 = vpop.f32.mrb[0].mxu0
        %1405 = vdwg.mxu0
        %v1406 = vmul.f32 %v1401, 0.17677669
        %v1407 = vadd.f32 %v1406, %v1016
        %v1408 = vsel %vm1069, %v1407, -inf
        %1409 = vmax.xlane.f32.xlu0 %v1408
        %v1410 = vpop.xlane.xlu0 %1409
        %v1411 = vsub.f32 %v1407, %v1410
        %v1412 = vmul.f32 %v1411, 1.442695
        %v1413 = vpow.pop %v1412
        %v1414 = vsel %vm1069, %v1413, 0.0
        %1415 = vadd.xlane.f32.xlu0 %v1414
        %v1416 = vpop.xlane.xlu0 %1415
        %v1417 = vrcp.pop %v1416
        %v1418 = vmul.f32 %v1413, %v1417
        %v1419 = vpack.c.bf16 %v1418, %v1418
        %1420 = vrot.lane.b32.xlu0 %v1019, 32
        %v1421 = vpop.permute.xlu0 %1420
        %v1423 = vsel %vm1069, %v1419, 0
        %v1426 = vsel %vm1085, %v1421, 0
        %1428 = vmatprep.subr.bf16.mxu0 0
        %1429 = vmatpush1.bf16.msra.mxu0 %v1426
        %1430 = vmatprep.subr.bf16.mxu0 0
        %1431 = vmatpush1.bf16.msra.mxu0 0
        %1432 = vmatprep.subr.bf16.mxu0 0
        %1433 = vmatpush1.bf16.msra.mxu0 0
        %1434 = vmatprep.subr.bf16.mxu0 0
        %1435 = vmatpush1.bf16.msra.mxu0 0
        %1436 = vmatprep.subr.bf16.mxu0 0
        %1437 = vmatpush1.bf16.msra.mxu0 0
        %1438 = vmatprep.subr.bf16.mxu0 0
        %1439 = vmatpush1.bf16.msra.mxu0 0
        %1440 = vmatprep.subr.bf16.mxu0 0
        %1441 = vmatpush1.bf16.msra.mxu0 0
        %1442 = vmatprep.subr.bf16.mxu0 0
        %1443 = vmatpush1.bf16.msra.mxu0 0
        %1444 = vmatprep.subr.bf16.mxu0 0
        %1445 = vmatpush1.bf16.msra.mxu0 0
        %1446 = vmatprep.subr.bf16.mxu0 0
        %1447 = vmatpush1.bf16.msra.mxu0 0
        %1448 = vmatprep.subr.bf16.mxu0 0
        %1449 = vmatpush1.bf16.msra.mxu0 0
        %1450 = vmatprep.subr.bf16.mxu0 0
        %1451 = vmatpush1.bf16.msra.mxu0 0
        %1452 = vmatprep.subr.bf16.mxu0 0
        %1453 = vmatpush1.bf16.msra.mxu0 0
        %1454 = vmatprep.subr.bf16.mxu0 0
        %1455 = vmatpush1.bf16.msra.mxu0 0
        %1456 = vmatprep.subr.bf16.mxu0 0
        %1457 = vmatpush1.bf16.msra.mxu0 0
        %1458 = vmatprep.subr.bf16.mxu0 0
        %1459 = vmatpush1.bf16.msra.mxu0 0
        %1460 = vmatprep.mubr.bf16.mxu0 0
        %1461 = vmatmul.mubr.bf16.gmra.mrb[0].mxu0 %v1423
        %v1462 = vpop.f32.mrb[0].mxu0
        %v1463 = vadd.f32 0.0, %v1462
        %v1464 = vpop.f32.mrb[0].mxu0
        %v1465 = vpop.f32.mrb[0].mxu0
        %v1466 = vpop.f32.mrb[0].mxu0
        %1467 = vdwg.mxu0
        %1469 = vrot.lane.b32.xlu0 %v1239, 32
        %v1470 = vpop.permute.xlu0 %1469
        %1473 = vrot.lane.b32.xlu0 %v1351, 64
        %v1474 = vpop.permute.xlu0 %1473
        %1477 = vrot.lane.b32.xlu0 %v1463, 96
        %v1478 = vpop.permute.xlu0 %1477
        %v1480 = vsel %vm1020, %v1124, %v1470
        %vm1481 = vcmask 523264
        %v1482 = vsel %vm1481, %v1480, %v1474
        %vm1483 = vcmask 785408
        %v1484 = vsel %vm1483, %v1482, %v1478
        %v1485 = vpack.c.bf16 %v1484, %v1484
        %v1486 = vld [vmem:[%s699] sm:$0xf]
        %v1487 = vld [vmem:[%s699 + $0x4] sm:$0xf]
        %v1488 = vld [vmem:[%s699 + $0x8] sm:$0xf]
        %v1489 = vld [vmem:[%s699 + $0xc] sm:$0xf]
        %v1490 = vld [vmem:[%s699 + $0x10] sm:$0xf]
        %v1491 = vld [vmem:[%s699 + $0x14] sm:$0xf]
        %v1492 = vld [vmem:[%s699 + $0x18] sm:$0xf]
        %v1493 = vld [vmem:[%s699 + $0x1c] sm:$0xf]
        %v1494 = vld [vmem:[%s699 + $0x20] sm:$0xf]
        %v1495 = vld [vmem:[%s699 + $0x24] sm:$0xf]
        %v1496 = vld [vmem:[%s699 + $0x28] sm:$0xf]
        %v1497 = vld [vmem:[%s699 + $0x2c] sm:$0xf]
        %v1498 = vld [vmem:[%s699 + $0x30] sm:$0xf]
        %v1499 = vld [vmem:[%s699 + $0x34] sm:$0xf]
        %v1500 = vld [vmem:[%s699 + $0x38] sm:$0xf]
        %v1501 = vld [vmem:[%s699 + $0x3c] sm:$0xf]
        %v1502 = vld [vmem:[%s702] sm:$0x1]
        %v1504 = vlaneseq
        %v1505 = vshrl.u32 %v1504, 7
        %v1506 = vsub.s32 0, %v1505
        %v1507 = vrot.slane %v1502, %v1506
        %v1525 = vunpack.c.l.b16 %v1486
        %v1526 = vunpack.c.l.b16 %v1487
        %v1527 = vunpack.c.l.b16 %v1488
        %v1528 = vunpack.c.l.b16 %v1489
        %v1529 = vunpack.c.l.b16 %v1490
        %v1530 = vunpack.c.l.b16 %v1491
        %v1531 = vunpack.c.l.b16 %v1492
        %v1532 = vunpack.c.l.b16 %v1493
        %v1533 = vunpack.c.l.b16 %v1494
        %v1534 = vunpack.c.l.b16 %v1495
        %v1535 = vunpack.c.l.b16 %v1496
        %v1536 = vunpack.c.l.b16 %v1497
        %v1537 = vunpack.c.l.b16 %v1498
        %v1538 = vunpack.c.l.b16 %v1499
        %v1539 = vunpack.c.l.b16 %v1500
        %v1540 = vunpack.c.l.b16 %v1501
        %v1541 = vpack.c.b16 %v1526, %v1525
        %v1542 = vpack.c.b16 %v1528, %v1527
        %v1543 = vpack.c.b16 %v1530, %v1529
        %v1544 = vpack.c.b16 %v1532, %v1531
        %v1545 = vpack.c.b16 %v1534, %v1533
        %v1546 = vpack.c.b16 %v1536, %v1535
        %v1547 = vpack.c.b16 %v1538, %v1537
        %v1548 = vpack.c.b16 %v1540, %v1539
        %1557 = vmatprep.subr.bf16.mxu0 0
        %1558 = vmatpush1.bf16.msra.mxu0 %v1541
        %1559 = vmatprep.subr.bf16.mxu0 0
        %1560 = vmatpush1.bf16.msra.mxu0 %v1542
        %1561 = vmatprep.subr.bf16.mxu0 0
        %1562 = vmatpush1.bf16.msra.mxu0 %v1543
        %1563 = vmatprep.subr.bf16.mxu0 0
        %1564 = vmatpush1.bf16.msra.mxu0 %v1544
        %1565 = vmatprep.subr.bf16.mxu0 0
        %1566 = vmatpush1.bf16.msra.mxu0 %v1545
        %1567 = vmatprep.subr.bf16.mxu0 0
        %1568 = vmatpush1.bf16.msra.mxu0 %v1546
        %1569 = vmatprep.subr.bf16.mxu0 0
        %1570 = vmatpush1.bf16.msra.mxu0 %v1547
        %1571 = vmatprep.subr.bf16.mxu0 0
        %1572 = vmatpush1.bf16.msra.mxu0 %v1548
        %1573 = vmatprep.subr.bf16.mxu0 0
        %1574 = vmatpush1.bf16.msra.mxu0 0
        %1575 = vmatprep.subr.bf16.mxu0 0
        %1576 = vmatpush1.bf16.msra.mxu0 0
        %1577 = vmatprep.subr.bf16.mxu0 0
        %1578 = vmatpush1.bf16.msra.mxu0 0
        %1579 = vmatprep.subr.bf16.mxu0 0
        %1580 = vmatpush1.bf16.msra.mxu0 0
        %1581 = vmatprep.subr.bf16.mxu0 0
        %1582 = vmatpush1.bf16.msra.mxu0 0
        %1583 = vmatprep.subr.bf16.mxu0 0
        %1584 = vmatpush1.bf16.msra.mxu0 0
        %1585 = vmatprep.subr.bf16.mxu0 0
        %1586 = vmatpush1.bf16.msra.mxu0 0
        %1587 = vmatprep.subr.bf16.mxu0 0
        %1588 = vmatpush1.bf16.msra.mxu0 0
        %1589 = vmatprep.mubr.bf16.mxu0 0
        %1590 = vmatmul.mubr.bf16.gmra.mrb[0].mxu0 %v1485
        %v1591 = vpop.f32.mrb[0].mxu0
        %v1592 = vadd.f32 %v1507, %v1591
        %v1593 = vpop.f32.mrb[0].mxu0
        %v1594 = vpop.f32.mrb[0].mxu0
        %v1595 = vpop.f32.mrb[0].mxu0
        %1596 = vdwg.mxu0
        %v1597 = vadd.f32 %v723, %v1592
        %v1598 = vld [vmem:[%s705] sm:$0x1]
        %v1599 = vld [vmem:[%s708] sm:$0x1]
        %1600 = vadd.xlane.f32.xlu0 %v1597
        %v1601 = vpop.xlane.xlu0 %1600
        %v1602 = vmul.f32 %v1601, %v728
        %v1603 = vsub.f32 %v1597, %v1602
        %v1604 = vmul.f32 %v1603, %v1603
        %1605 = vadd.xlane.f32.xlu0 %v1604
        %v1606 = vpop.xlane.xlu0 %1605
        %v1607 = vmul.f32 %v1606, %v728
        %v1608 = vadd.f32 %v1607, 1e-05
        %v1609 = vrsqrt.pop %v1608
        %v1610 = vmul.f32 %v1603, %v1609
        %v1612 = vlaneseq
        %v1613 = vshrl.u32 %v1612, 7
        %v1614 = vsub.s32 0, %v1613
        %v1615 = vrot.slane %v1598, %v1614
        %v1617 = vmul.f32 %v1610, %v1615
        %v1619 = vlaneseq
        %v1620 = vshrl.u32 %v1619, 7
        %v1621 = vsub.s32 0, %v1620
        %v1622 = vrot.slane %v1599, %v1621
        %v1624 = vadd.f32 %v1617, %v1622
        %v1625 = vpack.c.bf16 %v1624, %v1624
        %v1626 = vld [vmem:[%s593] sm:$0xff]
        %v1627 = vld [vmem:[%s593 + $0x8] sm:$0xff]
        %v1628 = vld [vmem:[%s593 + $0x10] sm:$0xff]
        %v1629 = vld [vmem:[%s593 + $0x18] sm:$0xff]
        %v1630 = vld [vmem:[%s593 + $0x20] sm:$0xff]
        %v1631 = vld [vmem:[%s593 + $0x28] sm:$0xff]
        %v1632 = vld [vmem:[%s593 + $0x30] sm:$0xff]
        %v1633 = vld [vmem:[%s593 + $0x38] sm:$0xff]
        %v1634 = vld [vmem:[%s593 + $0x40] sm:$0xff]
        %v1635 = vld [vmem:[%s593 + $0x48] sm:$0xff]
        %v1636 = vld [vmem:[%s593 + $0x50] sm:$0xff]
        %v1637 = vld [vmem:[%s593 + $0x58] sm:$0xff]
        %v1638 = vld [vmem:[%s593 + $0x60] sm:$0xff]
        %v1639 = vld [vmem:[%s593 + $0x68] sm:$0xff]
        %v1640 = vld [vmem:[%s593 + $0x70] sm:$0xff]
        %v1641 = vld [vmem:[%s593 + $0x78] sm:$0xff]
        %v1642 = vld [vmem:[%s593 + $0x80] sm:$0xff]
        %v1643 = vld [vmem:[%s593 + $0x88] sm:$0xff]
        %v1644 = vld [vmem:[%s593 + $0x90] sm:$0xff]
        %v1645 = vld [vmem:[%s593 + $0x98] sm:$0xff]
        %v1646 = vld [vmem:[%s593 + $0xa0] sm:$0xff]
        %v1647 = vld [vmem:[%s593 + $0xa8] sm:$0xff]
        %v1648 = vld [vmem:[%s593 + $0xb0] sm:$0xff]
        %v1649 = vld [vmem:[%s593 + $0xb8] sm:$0xff]
        %v1650 = vld [vmem:[%s593 + $0xc0] sm:$0xff]
        %v1651 = vld [vmem:[%s593 + $0xc8] sm:$0xff]
        %v1652 = vld [vmem:[%s593 + $0xd0] sm:$0xff]
        %v1653 = vld [vmem:[%s593 + $0xd8] sm:$0xff]
        %v1654 = vld [vmem:[%s593 + $0xe0] sm:$0xff]
        %v1655 = vld [vmem:[%s593 + $0xe8] sm:$0xff]
        %v1656 = vld [vmem:[%s593 + $0xf0] sm:$0xff]
        %v1657 = vld [vmem:[%s593 + $0xf8] sm:$0xff]
        %v1658 = vld [vmem:[%s712] sm:$0xf]
        %v1660 = vlaneseq
        %v1661 = vshrl.u32 %v1660, 7
        %v1662 = vsub.s32 0, %v1661
        %v1663 = vrot.slane %v1658, %v1662
        %v1664 = vlaneseq
        %v1665 = vshrl.u32 %v1664, 7
        %v1666 = vsub.s32 1, %v1665
        %v1667 = vrot.slane %v1658, %v1666
        %v1668 = vlaneseq
        %v1669 = vshrl.u32 %v1668, 7
        %v1670 = vsub.s32 2, %v1669
        %v1671 = vrot.slane %v1658, %v1670
        %v1672 = vlaneseq
        %v1673 = vshrl.u32 %v1672, 7
        %v1674 = vsub.s32 3, %v1673
        %v1675 = vrot.slane %v1658, %v1674
        %v1712 = vunpack.c.l.b16 %v1626
        %v1713 = vunpack.c.h.b16 %v1626
        %v1714 = vunpack.c.l.b16 %v1627
        %v1715 = vunpack.c.h.b16 %v1627
        %v1716 = vunpack.c.l.b16 %v1628
        %v1717 = vunpack.c.h.b16 %v1628
        %v1718 = vunpack.c.l.b16 %v1629
        %v1719 = vunpack.c.h.b16 %v1629
        %v1720 = vunpack.c.l.b16 %v1630
        %v1721 = vunpack.c.h.b16 %v1630
        %v1722 = vunpack.c.l.b16 %v1631
        %v1723 = vunpack.c.h.b16 %v1631
        %v1724 = vunpack.c.l.b16 %v1632
        %v1725 = vunpack.c.h.b16 %v1632
        %v1726 = vunpack.c.l.b16 %v1633
        %v1727 = vunpack.c.h.b16 %v1633
        %v1728 = vunpack.c.l.b16 %v1634
        %v1729 = vunpack.c.h.b16 %v1634
        %v1730 = vunpack.c.l.b16 %v1635
        %v1731 = vunpack.c.h.b16 %v1635
        %v1732 = vunpack.c.l.b16 %v1636
        %v1733 = vunpack.c.h.b16 %v1636
        %v1734 = vunpack.c.l.b16 %v1637
        %v1735 = vunpack.c.h.b16 %v1637
        %v1736 = vunpack.c.l.b16 %v1638
        %v1737 = vunpack.c.h.b16 %v1638
        %v1738 = vunpack.c.l.b16 %v1639
        %v1739 = vunpack.c.h.b16 %v1639
        %v1740 = vunpack.c.l.b16 %v1640
        %v1741 = vunpack.c.h.b16 %v1640
        %v1742 = vunpack.c.l.b16 %v1641
        %v1743 = vunpack.c.h.b16 %v1641
        %v1744 = vunpack.c.l.b16 %v1642
        %v1745 = vunpack.c.h.b16 %v1642
        %v1746 = vunpack.c.l.b16 %v1643
        %v1747 = vunpack.c.h.b16 %v1643
        %v1748 = vunpack.c.l.b16 %v1644
        %v1749 = vunpack.c.h.b16 %v1644
        %v1750 = vunpack.c.l.b16 %v1645
        %v1751 = vunpack.c.h.b16 %v1645
        %v1752 = vunpack.c.l.b16 %v1646
        %v1753 = vunpack.c.h.b16 %v1646
        %v1754 = vunpack.c.l.b16 %v1647
        %v1755 = vunpack.c.h.b16 %v1647
        %v1756 = vunpack.c.l.b16 %v1648
        %v1757 = vunpack.c.h.b16 %v1648
        %v1758 = vunpack.c.l.b16 %v1649
        %v1759 = vunpack.c.h.b16 %v1649
        %v1760 = vunpack.c.l.b16 %v1650
        %v1761 = vunpack.c.h.b16 %v1650
        %v1762 = vunpack.c.l.b16 %v1651
        %v1763 = vunpack.c.h.b16 %v1651
        %v1764 = vunpack.c.l.b16 %v1652
        %v1765 = vunpack.c.h.b16 %v1652
        %v1766 = vunpack.c.l.b16 %v1653
        %v1767 = vunpack.c.h.b16 %v1653
        %v1768 = vunpack.c.l.b16 %v1654
        %v1769 = vunpack.c.h.b16 %v1654
        %v1770 = vunpack.c.l.b16 %v1655
        %v1771 = vunpack.c.h.b16 %v1655
        %v1772 = vunpack.c.l.b16 %v1656
        %v1773 = vunpack.c.h.b16 %v1656
        %v1774 = vunpack.c.l.b16 %v1657
        %v1775 = vunpack.c.h.b16 %v1657
        %v1776 = vpack.c.b16 %v1716, %v1712
        %v1777 = vpack.c.b16 %v1717, %v1713
        %v1778 = vpack.c.b16 %v1718, %v1714
        %v1779 = vpack.c.b16 %v1719, %v1715
        %v1780 = vpack.c.b16 %v1724, %v1720
        %v1781 = vpack.c.b16 %v1725, %v1721
        %v1782 = vpack.c.b16 %v1726, %v1722
        %v1783 = vpack.c.b16 %v1727, %v1723
        %v1784 = vpack.c.b16 %v1732, %v1728
        %v1785 = vpack.c.b16 %v1733, %v1729
        %v1786 = vpack.c.b16 %v1734, %v1730
        %v1787 = vpack.c.b16 %v1735, %v1731
        %v1788 = vpack.c.b16 %v1740, %v1736
        %v1789 = vpack.c.b16 %v1741, %v1737
        %v1790 = vpack.c.b16 %v1742, %v1738
        %v1791 = vpack.c.b16 %v1743, %v1739
        %v1792 = vpack.c.b16 %v1748, %v1744
        %v1793 = vpack.c.b16 %v1749, %v1745
        %v1794 = vpack.c.b16 %v1750, %v1746
        %v1795 = vpack.c.b16 %v1751, %v1747
        %v1796 = vpack.c.b16 %v1756, %v1752
        %v1797 = vpack.c.b16 %v1757, %v1753
        %v1798 = vpack.c.b16 %v1758, %v1754
        %v1799 = vpack.c.b16 %v1759, %v1755
        %v1800 = vpack.c.b16 %v1764, %v1760
        %v1801 = vpack.c.b16 %v1765, %v1761
        %v1802 = vpack.c.b16 %v1766, %v1762
        %v1803 = vpack.c.b16 %v1767, %v1763
        %v1804 = vpack.c.b16 %v1772, %v1768
        %v1805 = vpack.c.b16 %v1773, %v1769
        %v1806 = vpack.c.b16 %v1774, %v1770
        %v1807 = vpack.c.b16 %v1775, %v1771
        %1840 = vmatprep.subr.bf16.mxu0 %v1777
        %1841 = vmatpush1.bf16.msra.mxu0 %v1776
        %1842 = vmatprep.subr.bf16.mxu0 %v1781
        %1843 = vmatpush1.bf16.msra.mxu0 %v1780
        %1844 = vmatprep.subr.bf16.mxu0 %v1785
        %1845 = vmatpush1.bf16.msra.mxu0 %v1784
        %1846 = vmatprep.subr.bf16.mxu0 %v1789
        %1847 = vmatpush1.bf16.msra.mxu0 %v1788
        %1848 = vmatprep.subr.bf16.mxu0 %v1793
        %1849 = vmatpush1.bf16.msra.mxu0 %v1792
        %1850 = vmatprep.subr.bf16.mxu0 %v1797
        %1851 = vmatpush1.bf16.msra.mxu0 %v1796
        %1852 = vmatprep.subr.bf16.mxu0 %v1801
        %1853 = vmatpush1.bf16.msra.mxu0 %v1800
        %1854 = vmatprep.subr.bf16.mxu0 %v1805
        %1855 = vmatpush1.bf16.msra.mxu0 %v1804
        %1856 = vmatprep.subr.bf16.mxu0 0
        %1857 = vmatpush1.bf16.msra.mxu0 0
        %1858 = vmatprep.subr.bf16.mxu0 0
        %1859 = vmatpush1.bf16.msra.mxu0 0
        %1860 = vmatprep.subr.bf16.mxu0 0
        %1861 = vmatpush1.bf16.msra.mxu0 0
        %1862 = vmatprep.subr.bf16.mxu0 0
        %1863 = vmatpush1.bf16.msra.mxu0 0
        %1864 = vmatprep.subr.bf16.mxu0 0
        %1865 = vmatpush1.bf16.msra.mxu0 0
        %1866 = vmatprep.subr.bf16.mxu0 0
        %1867 = vmatpush1.bf16.msra.mxu0 0
        %1868 = vmatprep.subr.bf16.mxu0 0
        %1869 = vmatpush1.bf16.msra.mxu0 0
        %1870 = vmatprep.subr.bf16.mxu0 0
        %1871 = vmatpush1.bf16.msra.mxu0 0
        %1872 = vmatprep.mubr.bf16.mxu0 0
        %1873 = vmatmul.mubr.bf16.gmra.mrb[0].mxu0 %v1625
        %v1874 = vpop.f32.mrb[0].mxu0
        %v1875 = vadd.f32 %v1663, %v1874
        %v1876 = vpop.f32.mrb[0].mxu0
        %v1877 = vadd.f32 %v1667, %v1876
        %v1878 = vpop.f32.mrb[0].mxu0
        %v1879 = vpop.f32.mrb[0].mxu0
        %1880 = vdwg.mxu0
        %1881 = vmatprep.subr.bf16.mxu0 %v1779
        %1882 = vmatpush1.bf16.msra.mxu0 %v1778
        %1883 = vmatprep.subr.bf16.mxu0 %v1783
        %1884 = vmatpush1.bf16.msra.mxu0 %v1782
        %1885 = vmatprep.subr.bf16.mxu0 %v1787
        %1886 = vmatpush1.bf16.msra.mxu0 %v1786
        %1887 = vmatprep.subr.bf16.mxu0 %v1791
        %1888 = vmatpush1.bf16.msra.mxu0 %v1790
        %1889 = vmatprep.subr.bf16.mxu0 %v1795
        %1890 = vmatpush1.bf16.msra.mxu0 %v1794
        %1891 = vmatprep.subr.bf16.mxu0 %v1799
        %1892 = vmatpush1.bf16.msra.mxu0 %v1798
        %1893 = vmatprep.subr.bf16.mxu0 %v1803
        %1894 = vmatpush1.bf16.msra.mxu0 %v1802
        %1895 = vmatprep.subr.bf16.mxu0 %v1807
        %1896 = vmatpush1.bf16.msra.mxu0 %v1806
        %1897 = vmatprep.subr.bf16.mxu0 0
        %1898 = vmatpush1.bf16.msra.mxu0 0
        %1899 = vmatprep.subr.bf16.mxu0 0
        %1900 = vmatpush1.bf16.msra.mxu0 0
        %1901 = vmatprep.subr.bf16.mxu0 0
        %1902 = vmatpush1.bf16.msra.mxu0 0
        %1903 = vmatprep.subr.bf16.mxu0 0
        %1904 = vmatpush1.bf16.msra.mxu0 0
        %1905 = vmatprep.subr.bf16.mxu0 0
        %1906 = vmatpush1.bf16.msra.mxu0 0
        %1907 = vmatprep.subr.bf16.mxu0 0
        %1908 = vmatpush1.bf16.msra.mxu0 0
        %1909 = vmatprep.subr.bf16.mxu0 0
        %1910 = vmatpush1.bf16.msra.mxu0 0
        %1911 = vmatprep.subr.bf16.mxu0 0
        %1912 = vmatpush1.bf16.msra.mxu0 0
        %1913 = vmatprep.mubr.bf16.mxu0 0
        %1914 = vmatmul.mubr.bf16.gmra.mrb[0].mxu0 %v1625
        %v1915 = vpop.f32.mrb[0].mxu0
        %v1916 = vadd.f32 %v1671, %v1915
        %v1917 = vpop.f32.mrb[0].mxu0
        %v1918 = vadd.f32 %v1675, %v1917
        %v1919 = vpop.f32.mrb[0].mxu0
        %v1920 = vpop.f32.mrb[0].mxu0
        %1921 = vdwg.mxu0
        %v1922 = vmul.f32 %v1875, 0.5
        %v1923 = vmul.f32 %v1877, 0.5
        %v1924 = vmul.f32 %v1916, 0.5
        %v1925 = vmul.f32 %v1918, 0.5
        %v1926 = vmul.f32 %v1875, 0.044715
        %v1927 = vmul.f32 %v1877, 0.044715
        %v1928 = vmul.f32 %v1916, 0.044715
        %v1929 = vmul.f32 %v1918, 0.044715
        %v1930 = vmul.f32 %v1926, %v1875
        %v1931 = vmul.f32 %v1927, %v1877
        %v1932 = vmul.f32 %v1928, %v1916
        %v1933 = vmul.f32 %v1929, %v1918
        %v1934 = vmul.f32 %v1930, %v1875
        %v1935 = vmul.f32 %v1931, %v1877
        %v1936 = vmul.f32 %v1932, %v1916
        %v1937 = vmul.f32 %v1933, %v1918
        %v1938 = vadd.f32 %v1875, %v1934
        %v1939 = vadd.f32 %v1877, %v1935
        %v1940 = vadd.f32 %v1916, %v1936
        %v1941 = vadd.f32 %v1918, %v1937
        %v1942 = vmul.f32 %v1938, 0.7978846
        %v1943 = vmul.f32 %v1939, 0.7978846
        %v1944 = vmul.f32 %v1940, 0.7978846
        %v1945 = vmul.f32 %v1941, 0.7978846
        %v1946 = vtanh.pop %v1942
        %v1947 = vtanh.pop %v1943
        %v1948 = vtanh.pop %v1944
        %v1949 = vtanh.pop %v1945
        %v1950 = vadd.f32 %v1946, 1.0
        %v1951 = vadd.f32 %v1947, 1.0
        %v1952 = vadd.f32 %v1948, 1.0
        %v1953 = vadd.f32 %v1949, 1.0
        %v1954 = vmul.f32 %v1922, %v1950
        %v1955 = vmul.f32 %v1923, %v1951
        %v1956 = vmul.f32 %v1924, %v1952
        %v1957 = vmul.f32 %v1925, %v1953
        %v1958 = vpack.c.bf16 %v1954, %v1954
        %v1959 = vpack.c.bf16 %v1955, %v1955
        %v1960 = vpack.c.bf16 %v1956, %v1956
        %v1961 = vpack.c.bf16 %v1957, %v1957
        %v1962 = vld [vmem:[%s602] sm:$0xf]
        %v1963 = vld [vmem:[%s602 + $0x4] sm:$0xf]
        %v1964 = vld [vmem:[%s602 + $0x8] sm:$0xf]
        %v1965 = vld [vmem:[%s602 + $0xc] sm:$0xf]
        %v1966 = vld [vmem:[%s602 + $0x10] sm:$0xf]
        %v1967 = vld [vmem:[%s602 + $0x14] sm:$0xf]
        %v1968 = vld [vmem:[%s602 + $0x18] sm:$0xf]
        %v1969 = vld [vmem:[%s602 + $0x1c] sm:$0xf]
        %v1970 = vld [vmem:[%s602 + $0x20] sm:$0xf]
        %v1971 = vld [vmem:[%s602 + $0x24] sm:$0xf]
        %v1972 = vld [vmem:[%s602 + $0x28] sm:$0xf]
        %v1973 = vld [vmem:[%s602 + $0x2c] sm:$0xf]
        %v1974 = vld [vmem:[%s602 + $0x30] sm:$0xf]
        %v1975 = vld [vmem:[%s602 + $0x34] sm:$0xf]
        %v1976 = vld [vmem:[%s602 + $0x38] sm:$0xf]
        %v1977 = vld [vmem:[%s602 + $0x3c] sm:$0xf]
        %v1978 = vld [vmem:[%s602 + $0x40] sm:$0xf]
        %v1979 = vld [vmem:[%s602 + $0x44] sm:$0xf]
        %v1980 = vld [vmem:[%s602 + $0x48] sm:$0xf]
        %v1981 = vld [vmem:[%s602 + $0x4c] sm:$0xf]
        %v1982 = vld [vmem:[%s602 + $0x50] sm:$0xf]
        %v1983 = vld [vmem:[%s602 + $0x54] sm:$0xf]
        %v1984 = vld [vmem:[%s602 + $0x58] sm:$0xf]
        %v1985 = vld [vmem:[%s602 + $0x5c] sm:$0xf]
        %v1986 = vld [vmem:[%s602 + $0x60] sm:$0xf]
        %v1987 = vld [vmem:[%s602 + $0x64] sm:$0xf]
        %v1988 = vld [vmem:[%s602 + $0x68] sm:$0xf]
        %v1989 = vld [vmem:[%s602 + $0x6c] sm:$0xf]
        %v1990 = vld [vmem:[%s602 + $0x70] sm:$0xf]
        %v1991 = vld [vmem:[%s602 + $0x74] sm:$0xf]
        %v1992 = vld [vmem:[%s602 + $0x78] sm:$0xf]
        %v1993 = vld [vmem:[%s602 + $0x7c] sm:$0xf]
        %v1994 = vld [vmem:[%s602 + $0x80] sm:$0xf]
        %v1995 = vld [vmem:[%s602 + $0x84] sm:$0xf]
        %v1996 = vld [vmem:[%s602 + $0x88] sm:$0xf]
        %v1997 = vld [vmem:[%s602 + $0x8c] sm:$0xf]
        %v1998 = vld [vmem:[%s602 + $0x90] sm:$0xf]
        %v1999 = vld [vmem:[%s602 + $0x94] sm:$0xf]
        %v2000 = vld [vmem:[%s602 + $0x98] sm:$0xf]
        %v2001 = vld [vmem:[%s602 + $0x9c] sm:$0xf]
        %v2002 = vld [vmem:[%s602 + $0xa0] sm:$0xf]
        %v2003 = vld [vmem:[%s602 + $0xa4] sm:$0xf]
        %v2004 = vld [vmem:[%s602 + $0xa8] sm:$0xf]
        %v2005 = vld [vmem:[%s602 + $0xac] sm:$0xf]
        %v2006 = vld [vmem:[%s602 + $0xb0] sm:$0xf]
        %v2007 = vld [vmem:[%s602 + $0xb4] sm:$0xf]
        %v2008 = vld [vmem:[%s602 + $0xb8] sm:$0xf]
        %v2009 = vld [vmem:[%s602 + $0xbc] sm:$0xf]
        %v2010 = vld [vmem:[%s602 + $0xc0] sm:$0xf]
        %v2011 = vld [vmem:[%s602 + $0xc4] sm:$0xf]
        %v2012 = vld [vmem:[%s602 + $0xc8] sm:$0xf]
        %v2013 = vld [vmem:[%s602 + $0xcc] sm:$0xf]
        %v2014 = vld [vmem:[%s602 + $0xd0] sm:$0xf]
        %v2015 = vld [vmem:[%s602 + $0xd4] sm:$0xf]
        %v2016 = vld [vmem:[%s602 + $0xd8] sm:$0xf]
        %v2017 = vld [vmem:[%s602 + $0xdc] sm:$0xf]
        %v2018 = vld [vmem:[%s602 + $0xe0] sm:$0xf]
        %v2019 = vld [vmem:[%s602 + $0xe4] sm:$0xf]
        %v2020 = vld [vmem:[%s602 + $0xe8] sm:$0xf]
        %v2021 = vld [vmem:[%s602 + $0xec] sm:$0xf]
        %v2022 = vld [vmem:[%s602 + $0xf0] sm:$0xf]
        %v2023 = vld [vmem:[%s602 + $0xf4] sm:$0xf]
        %v2024 = vld [vmem:[%s602 + $0xf8] sm:$0xf]
        %v2025 = vld [vmem:[%s602 + $0xfc] sm:$0xf]
        %v2026 = vld [vmem:[%s715] sm:$0x1]
        %v2028 = vlaneseq
        %v2029 = vshrl.u32 %v2028, 7
        %v2030 = vsub.s32 0, %v2029
        %v2031 = vrot.slane %v2026, %v2030
        %v2097 = vunpack.c.l.b16 %v1962
        %v2098 = vunpack.c.l.b16 %v1963
        %v2099 = vunpack.c.l.b16 %v1964
        %v2100 = vunpack.c.l.b16 %v1965
        %v2101 = vunpack.c.l.b16 %v1966
        %v2102 = vunpack.c.l.b16 %v1967
        %v2103 = vunpack.c.l.b16 %v1968
        %v2104 = vunpack.c.l.b16 %v1969
        %v2105 = vunpack.c.l.b16 %v1970
        %v2106 = vunpack.c.l.b16 %v1971
        %v2107 = vunpack.c.l.b16 %v1972
        %v2108 = vunpack.c.l.b16 %v1973
        %v2109 = vunpack.c.l.b16 %v1974
        %v2110 = vunpack.c.l.b16 %v1975
        %v2111 = vunpack.c.l.b16 %v1976
        %v2112 = vunpack.c.l.b16 %v1977
        %v2113 = vunpack.c.l.b16 %v1978
        %v2114 = vunpack.c.l.b16 %v1979
        %v2115 = vunpack.c.l.b16 %v1980
        %v2116 = vunpack.c.l.b16 %v1981
        %v2117 = vunpack.c.l.b16 %v1982
        %v2118 = vunpack.c.l.b16 %v1983
        %v2119 = vunpack.c.l.b16 %v1984
        %v2120 = vunpack.c.l.b16 %v1985
        %v2121 = vunpack.c.l.b16 %v1986
        %v2122 = vunpack.c.l.b16 %v1987
        %v2123 = vunpack.c.l.b16 %v1988
        %v2124 = vunpack.c.l.b16 %v1989
        %v2125 = vunpack.c.l.b16 %v1990
        %v2126 = vunpack.c.l.b16 %v1991
        %v2127 = vunpack.c.l.b16 %v1992
        %v2128 = vunpack.c.l.b16 %v1993
        %v2129 = vunpack.c.l.b16 %v1994
        %v2130 = vunpack.c.l.b16 %v1995
        %v2131 = vunpack.c.l.b16 %v1996
        %v2132 = vunpack.c.l.b16 %v1997
        %v2133 = vunpack.c.l.b16 %v1998
        %v2134 = vunpack.c.l.b16 %v1999
        %v2135 = vunpack.c.l.b16 %v2000
        %v2136 = vunpack.c.l.b16 %v2001
        %v2137 = vunpack.c.l.b16 %v2002
        %v2138 = vunpack.c.l.b16 %v2003
        %v2139 = vunpack.c.l.b16 %v2004
        %v2140 = vunpack.c.l.b16 %v2005
        %v2141 = vunpack.c.l.b16 %v2006
        %v2142 = vunpack.c.l.b16 %v2007
        %v2143 = vunpack.c.l.b16 %v2008
        %v2144 = vunpack.c.l.b16 %v2009
        %v2145 = vunpack.c.l.b16 %v2010
        %v2146 = vunpack.c.l.b16 %v2011
        %v2147 = vunpack.c.l.b16 %v2012
        %v2148 = vunpack.c.l.b16 %v2013
        %v2149 = vunpack.c.l.b16 %v2014
        %v2150 = vunpack.c.l.b16 %v2015
        %v2151 = vunpack.c.l.b16 %v2016
        %v2152 = vunpack.c.l.b16 %v2017
        %v2153 = vunpack.c.l.b16 %v2018
        %v2154 = vunpack.c.l.b16 %v2019
        %v2155 = vunpack.c.l.b16 %v2020
        %v2156 = vunpack.c.l.b16 %v2021
        %v2157 = vunpack.c.l.b16 %v2022
        %v2158 = vunpack.c.l.b16 %v2023
        %v2159 = vunpack.c.l.b16 %v2024
        %v2160 = vunpack.c.l.b16 %v2025
        %v2161 = vpack.c.b16 %v2098, %v2097
        %v2162 = vpack.c.b16 %v2100, %v2099
        %v2163 = vpack.c.b16 %v2102, %v2101
        %v2164 = vpack.c.b16 %v2104, %v2103
        %v2165 = vpack.c.b16 %v2106, %v2105
        %v2166 = vpack.c.b16 %v2108, %v2107
        %v2167 = vpack.c.b16 %v2110, %v2109
        %v2168 = vpack.c.b16 %v2112, %v2111
        %v2169 = vpack.c.b16 %v2114, %v2113
        %v2170 = vpack.c.b16 %v2116, %v2115
        %v2171 = vpack.c.b16 %v2118, %v2117
        %v2172 = vpack.c.b16 %v2120, %v2119
        %v2173 = vpack.c.b16 %v2122, %v2121
        %v2174 = vpack.c.b16 %v2124, %v2123
        %v2175 = vpack.c.b16 %v2126, %v2125
        %v2176 = vpack.c.b16 %v2128, %v2127
        %v2177 = vpack.c.b16 %v2130, %v2129
        %v2178 = vpack.c.b16 %v2132, %v2131
        %v2179 = vpack.c.b16 %v2134, %v2133
        %v2180 = vpack.c.b16 %v2136, %v2135
        %v2181 = vpack.c.b16 %v2138, %v2137
        %v2182 = vpack.c.b16 %v2140, %v2139
        %v2183 = vpack.c.b16 %v2142, %v2141
        %v2184 = vpack.c.b16 %v2144, %v2143
        %v2185 = vpack.c.b16 %v2146, %v2145
        %v2186 = vpack.c.b16 %v2148, %v2147
        %v2187 = vpack.c.b16 %v2150, %v2149
        %v2188 = vpack.c.b16 %v2152, %v2151
        %v2189 = vpack.c.b16 %v2154, %v2153
        %v2190 = vpack.c.b16 %v2156, %v2155
        %v2191 = vpack.c.b16 %v2158, %v2157
        %v2192 = vpack.c.b16 %v2160, %v2159
        %2225 = vmatprep.subr.bf16.mxu0 0
        %2226 = vmatpush1.bf16.msra.mxu0 %v2161
        %2227 = vmatprep.subr.bf16.mxu0 0
        %2228 = vmatpush1.bf16.msra.mxu0 %v2162
        %2229 = vmatprep.subr.bf16.mxu0 0
        %2230 = vmatpush1.bf16.msra.mxu0 %v2163
        %2231 = vmatprep.subr.bf16.mxu0 0
        %2232 = vmatpush1.bf16.msra.mxu0 %v2164
        %2233 = vmatprep.subr.bf16.mxu0 0
        %2234 = vmatpush1.bf16.msra.mxu0 %v2165
        %2235 = vmatprep.subr.bf16.mxu0 0
        %2236 = vmatpush1.bf16.msra.mxu0 %v2166
        %2237 = vmatprep.subr.bf16.mxu0 0
        %2238 = vmatpush1.bf16.msra.mxu0 %v2167
        %2239 = vmatprep.subr.bf16.mxu0 0
        %2240 = vmatpush1.bf16.msra.mxu0 %v2168
        %2241 = vmatprep.subr.bf16.mxu0 0
        %2242 = vmatpush1.bf16.msra.mxu0 %v2169
        %2243 = vmatprep.subr.bf16.mxu0 0
        %2244 = vmatpush1.bf16.msra.mxu0 %v2170
        %2245 = vmatprep.subr.bf16.mxu0 0
        %2246 = vmatpush1.bf16.msra.mxu0 %v2171
        %2247 = vmatprep.subr.bf16.mxu0 0
        %2248 = vmatpush1.bf16.msra.mxu0 %v2172
        %2249 = vmatprep.subr.bf16.mxu0 0
        %2250 = vmatpush1.bf16.msra.mxu0 %v2173
        %2251 = vmatprep.subr.bf16.mxu0 0
        %2252 = vmatpush1.bf16.msra.mxu0 %v2174
        %2253 = vmatprep.subr.bf16.mxu0 0
        %2254 = vmatpush1.bf16.msra.mxu0 %v2175
        %2255 = vmatprep.subr.bf16.mxu0 0
        %2256 = vmatpush1.bf16.msra.mxu0 %v2176
        %2257 = vmatprep.mubr.bf16.mxu0 %v1959
        %2258 = vmatmul.mubr.bf16.gmra.mrb[0].mxu0 %v1958
        %v2259 = vpop.f32.mrb[0].mxu0
        %v2260 = vadd.f32 %v2031, %v2259
        %v2261 = vpop.f32.mrb[0].mxu0
        %v2262 = vpop.f32.mrb[0].mxu0
        %v2263 = vpop.f32.mrb[0].mxu0
        %2264 = vdwg.mxu0
        %2265 = vmatprep.subr.bf16.mxu0 0
        %2266 = vmatpush1.bf16.msra.mxu0 %v2177
        %2267 = vmatprep.subr.bf16.mxu0 0
        %2268 = vmatpush1.bf16.msra.mxu0 %v2178
        %2269 = vmatprep.subr.bf16.mxu0 0
        %2270 = vmatpush1.bf16.msra.mxu0 %v2179
        %2271 = vmatprep.subr.bf16.mxu0 0
        %2272 = vmatpush1.bf16.msra.mxu0 %v2180
        %2273 = vmatprep.subr.bf16.mxu0 0
        %2274 = vmatpush1.bf16.msra.mxu0 %v2181
        %2275 = vmatprep.subr.bf16.mxu0 0
        %2276 = vmatpush1.bf16.msra.mxu0 %v2182
        %2277 = vmatprep.subr.bf16.mxu0 0
        %2278 = vmatpush1.bf16.msra.mxu0 %v2183
        %2279 = vmatprep.subr.bf16.mxu0 0
        %2280 = vmatpush1.bf16.msra.mxu0 %v2184
        %2281 = vmatprep.subr.bf16.mxu0 0
        %2282 = vmatpush1.bf16.msra.mxu0 %v2185
        %2283 = vmatprep.subr.bf16.mxu0 0
        %2284 = vmatpush1.bf16.msra.mxu0 %v2186
        %2285 = vmatprep.subr.bf16.mxu0 0
        %2286 = vmatpush1.bf16.msra.mxu0 %v2187
        %2287 = vmatprep.subr.bf16.mxu0 0
        %2288 = vmatpush1.bf16.msra.mxu0 %v2188
        %2289 = vmatprep.subr.bf16.mxu0 0
        %2290 = vmatpush1.bf16.msra.mxu0 %v2189
        %2291 = vmatprep.subr.bf16.mxu0 0
        %2292 = vmatpush1.bf16.msra.mxu0 %v2190
        %2293 = vmatprep.subr.bf16.mxu0 0
        %2294 = vmatpush1.bf16.msra.mxu0 %v2191
        %2295 = vmatprep.subr.bf16.mxu0 0
        %2296 = vmatpush1.bf16.msra.mxu0 %v2192
        %2297 = vmatprep.mubr.bf16.mxu0 %v1961
        %2298 = vmatmul.mubr.bf16.gmra.mrb[0].mxu0 %v1960
        %v2299 = vpop.f32.mrb[0].mxu0
        %v2300 = vadd.f32 %v2260, %v2299
        %v2301 = vpop.f32.mrb[0].mxu0
        %v2302 = vpop.f32.mrb[0].mxu0
        %v2303 = vpop.f32.mrb[0].mxu0
        %2304 = vdwg.mxu0
        %v2305 = vadd.f32 %v1597, %v2300
        %2306 = vst [vmem:[#allocation2] sm:$0xff] %v2305
        %p2307 = scmp.eq.s32.totalorder %s33, 1
        // Predicated region
        $region97: #{gpt2_forward.1} parent=79 // pred_check
          %p2308 = pneg %p2307
        $region98: #{gpt2_forward.1} parent=79 // pred_check_branch
          %2310 = sbr.rel (%p2308) target = $region100
        $region99: #{gpt2_forward.1} parent=79 // pred_region
          %v2311 = vld [vmem:[%s13] sm:$0x1]
          %v2312 = vld [vmem:[%s14] sm:$0x1]
          %2313 = vadd.xlane.f32.xlu0 %v2305
          %v2314 = vpop.xlane.xlu0 %2313
          %v2315 = vmul.f32 %v2314, %v728
          %v2316 = vsub.f32 %v2305, %v2315
          %v2317 = vmul.f32 %v2316, %v2316
          %2318 = vadd.xlane.f32.xlu0 %v2317
          %v2319 = vpop.xlane.xlu0 %2318
          %v2320 = vmul.f32 %v2319, %v728
          %v2321 = vadd.f32 %v2320, 1e-05
          %v2322 = vrsqrt.pop %v2321
          %v2323 = vmul.f32 %v2316, %v2322
          %v2325 = vlaneseq
          %v2326 = vshrl.u32 %v2325, 7
          %v2327 = vsub.s32 0, %v2326
          %v2328 = vrot.slane %v2311, %v2327
          %v2330 = vmul.f32 %v2323, %v2328
          %v2332 = vlaneseq
          %v2333 = vshrl.u32 %v2332, 7
          %v2334 = vsub.s32 0, %v2333
          %v2335 = vrot.slane %v2312, %v2334
          %v2337 = vadd.f32 %v2330, %v2335
          %2338 = vst [vmem:[#allocation9] sm:$0xff] %v2337
        $region100: #{gpt2_forward.1} parent=79 // pred_fallthru
          _
        // Predicated region
        $region101: #{gpt2_forward.1} parent=79 // pred_check
          %p2339 = pneg %p421
        $region102: #{gpt2_forward.1} parent=79 // pred_check_branch
          %2341 = sbr.rel (%p2339) target = $region104
        $region103: #{gpt2_forward.1} parent=79 // pred_region
          %s2343 = ssub.s32 128, 128
          %2344 = vsyncadd [#allocation5], %s2343
          %s2346 = sshll.u32 [#allocation9], 4
          %s2347 = int_to_ptr.vmem [resolvable:$true] %s2346
          %2349 = dma.vmem_to_hbm [thread:$0]  %s2347, 128, %s15, [#allocation5]
        $region104: #{gpt2_forward.1} parent=79 // pred_fallthru
          _
        // Predicated region
        $region105: #{gpt2_forward.1} parent=79 // pred_check
          %p2350 = pneg %p421
        $region106: #{gpt2_forward.1} parent=79 // pred_check_branch
          %2352 = sbr.rel (%p2350) target = $region108
        $region107: #{gpt2_forward.1} parent=79 // pred_region
          %2353 = dma.done [#allocation5], 128
        $region108: #{gpt2_forward.1} parent=79 // pred_fallthru
          _
      $region80: #{gpt2_forward.1} parent=5 // pred_fallthru
        _
      %p2354 = scmp.le.s32.totalorder 2, %s28
      // Predicated region
      $region109: #{gpt2_forward.1} parent=5 // pred_check
        %p2355 = pneg %p2354
      $region110: #{gpt2_forward.1} parent=5 // pred_check_branch
        %2357 = sbr.rel (%p2355) target = $region112
      $region111: #{gpt2_forward.1} parent=5 // pred_region
        %s2358 = ssub.s32 %s28, 2
      $region112: #{gpt2_forward.1} parent=5 // pred_fallthru
        _
    $region6: #{gpt2_forward.1} parent=1 // loop_footer
      %s32 = sadd.s32 1, %s28
    $region7: #{gpt2_forward.1} parent=1 // loop_footer_branch
      %27 = sbr.rel target = $region3
    $region8: #{gpt2_forward.1} parent=1 // loop_exit
      _
    %2359 = vsyncpa [#allocation4], 1
    %s2360 = scalar_lea.sflag [#allocation4], 1
    %2361 = vsyncpa %s2360, 1
    %2362 = vsyncpa [#allocation7], 1
    %s2363 = scalar_lea.sflag [#allocation7], 1
    %2364 = vsyncpa %s2363, 1
    %2365 = vsyncpa [#allocation5], 1
    %s2366 = scalar_lea.sflag [#allocation5], 1
    %2367 = vsyncpa %s2366, 1

</llo_original>
